<compile_context>
chip_gen: v7x
topology: tpu7x:2x2x1
jax: 0.10.0
libtpu: 0.0.40
codegen_flags: <defaults>
</compile_context>

<pallas_src>
import jax
import jax.numpy as jnp
from jax.experimental import pallas as pl
from jax.experimental.pallas import tpu as pltpu


def _expansion_kernel(x_ref, w_ref, shift_ref, o_ref):
    # x_ref:     (1, Cin, H, W)    un-padded low-res NCHW tile (f32)
    # w_ref:     (4*Cout, 9*Cin)   phase-expanded conv weights, BN scale folded (bf16)
    # shift_ref: (4*Cout, 1)       folded BN shift + conv bias (f32)
    # o_ref:     (1, 4*Cout, H*W)  packed output, rows ordered (py, px, cout) (bf16)
    xv = x_ref[0]                                   # (Cin, H, W) f32
    Cin, H, W = xv.shape

    # Zero-pad by 1 in H and W inside VMEM (f32 concats -> well-supported relayouts),
    # then cast once to bf16 for the MXU.  Avoids an HBM-materialized padded copy.
    zr = jnp.zeros((Cin, 1, W), xv.dtype)
    xp = jnp.concatenate([zr, xv, zr], axis=1)      # (Cin, H+2, W)
    zc = jnp.zeros((Cin, H + 2, 1), xv.dtype)
    xp = jnp.concatenate([zc, xp, zc], axis=2)      # (Cin, H+2, W+2)
    xp = xp.astype(jnp.bfloat16)

    # im2col over the 9 taps of the padded low-res image -> (9*Cin, H*W).
    # Row order (a, b, ci) matches the column order of w_ref.
    cols = [xp[:, a:a + H, b:b + W].reshape(Cin, H * W)
            for a in range(3) for b in range(3)]
    patches = jnp.concatenate(cols, axis=0)         # (9*Cin, H*W) bf16

    # One MXU matmul covering all 4 output phases; f32 accumulation.
    acc = jnp.dot(w_ref[...], patches, preferred_element_type=jnp.float32)

    # BN shift (+ conv bias) and ReLU epilogue; store packed bf16.
    o_ref[0] = jnp.maximum(acc + shift_ref[...], 0.0).astype(o_ref.dtype)


def expansion_unit_forward(x_nchw, w_hwio, conv_bias, gamma, beta,
                           running_mean, running_var, eps=1e-5):
    """Upsample(2x, nearest) -> Conv2d(3x3, pad=1) -> BatchNorm2d(eval) -> ReLU (NCHW)."""
    B, Cin, H, W = x_nchw.shape
    Cout = w_hwio.shape[-1]

    # ---- fold BN (inference) into per-channel scale/shift -------------------------
    inv = (gamma / jnp.sqrt(running_var + eps)).astype(jnp.float32)          # (Cout,)
    shift = (beta - running_mean * inv + conv_bias * inv).astype(jnp.float32)
    shift_packed = jnp.tile(shift, 4).reshape(4 * Cout, 1)                   # (py,px,co)

    # ---- phase-decomposed effective weights ---------------------------------------
    # For high-res output phase (py, px) = (Y%2, X%2), the 3x3 tap (ky, kx) reads the
    # low-res pixel at offset ((py+ky-1)//2, (px+kx-1)//2); with a 1-pixel zero pad on
    # the low-res image that is tap (a, b) = offset + 1 of its 3x3 neighbourhood.
    # Expanding to the full 3x3 neighbourhood (zeros at unused taps) lets all 4 phases
    # share one im2col matrix and one matmul.  BN scale is folded in here.
    w_f32 = w_hwio.astype(jnp.float32)
    w_eff = jnp.zeros((2, 2, Cout, 3, 3, Cin), jnp.float32)
    for py in range(2):
        for px in range(2):
            for ky in range(3):
                for kx in range(3):
                    a = (py + ky - 1) // 2 + 1
                    b = (px + kx - 1) // 2 + 1
                    w_eff = w_eff.at[py, px, :, a, b, :].add(w_f32[ky, kx].T)
    w_eff = w_eff * inv.reshape(1, 1, Cout, 1, 1, 1)       # fold BN scale
    w_mat = w_eff.reshape(4 * Cout, 9 * Cin).astype(jnp.bfloat16)

    out_packed = pl.pallas_call(
        _expansion_kernel,
        out_shape=jax.ShapeDtypeStruct((B, 4 * Cout, H * W), jnp.bfloat16),
        grid=(B,),
        in_specs=[
            pl.BlockSpec((1, Cin, H, W), lambda bb: (bb, 0, 0, 0)),
            pl.BlockSpec((4 * Cout, 9 * Cin), lambda bb: (0, 0)),
            pl.BlockSpec((4 * Cout, 1), lambda bb: (0, 0)),
        ],
        out_specs=pl.BlockSpec((1, 4 * Cout, H * W), lambda bb: (bb, 0, 0)),
        compiler_params=pltpu.CompilerParams(
            dimension_semantics=("parallel",)),
    )(x_nchw, w_mat, shift_packed)

    # ---- interleave phases back into NCHW (single fused transpose + f32 cast) -----
    out = out_packed.reshape(B, 2, 2, Cout, H, W)
    out = jnp.transpose(out, (0, 3, 4, 1, 5, 2))           # (B, Cout, H, 2, W, 2)
    return out.reshape(B, Cout, 2 * H, 2 * W).astype(jnp.float32)


def _reference(x_nchw, w_hwio, conv_bias, gamma, beta, running_mean, running_var, eps=1e-5):
    x = jnp.transpose(x_nchw, (0, 2, 3, 1)).astype(jnp.float32)
    x = jnp.repeat(jnp.repeat(x, 2, axis=1), 2, axis=2)
    y = jax.lax.conv_general_dilated(
        x, w_hwio.astype(jnp.float32), window_strides=(1, 1), padding="SAME",
        dimension_numbers=("NHWC", "HWIO", "NHWC"))
    y = y + conv_bias.reshape(1, 1, 1, -1)
    inv = gamma / jnp.sqrt(running_var + eps)
    y = (y - running_mean.reshape(1, 1, 1, -1)) * inv.reshape(1, 1, 1, -1) \
        + beta.reshape(1, 1, 1, -1)
    y = jnp.maximum(y, 0.0)
    return jnp.transpose(y, (0, 3, 1, 2))


if __name__ == "__main__":
    B, Cin, Hs, Ws = 2, 4, 16, 16     # input (NCHW); output is 32x32
    Cout = 8

    key = jax.random.PRNGKey(0)
    kx, kw, kb, kg, kbe, km, kv = jax.random.split(key, 7)

    x = jax.random.normal(kx, (B, Cin, Hs, Ws), dtype=jnp.float32)

    # deterministic synthetic parameters (shapes per nn.Conv2d / nn.BatchNorm2d)
    w_hwio = 0.1 * jax.random.normal(kw, (3, 3, Cin, Cout), dtype=jnp.float32)
    conv_bias = 0.05 * jax.random.normal(kb, (Cout,), dtype=jnp.float32)
    gamma = 1.0 + 0.1 * jax.random.normal(kg, (Cout,), dtype=jnp.float32)
    beta = 0.1 * jax.random.normal(kbe, (Cout,), dtype=jnp.float32)
    running_mean = 0.1 * jax.random.normal(km, (Cout,), dtype=jnp.float32)
    running_var = jnp.abs(1.0 + 0.1 * jax.random.normal(kv, (Cout,), dtype=jnp.float32))

    out = expansion_unit_forward(x, w_hwio, conv_bias, gamma, beta,
                                 running_mean, running_var)
    out = jax.block_until_ready(out)

    ref = _reference(x, w_hwio, conv_bias, gamma, beta, running_mean, running_var)
    assert out.shape == (B, Cout, 2 * Hs, 2 * Ws)
    max_err = float(jnp.max(jnp.abs(out - ref)))
    # bf16 matmul operands + bf16 packed intermediate (f32 accumulation) vs. a pure
    # f32 reference -> loosened absolute tolerance.
    assert max_err < 4e-2, f"max abs err {max_err}"

    print("KERNEL_OK")
</pallas_src>

<mosaic_0001>
module attributes {stable_mosaic.version = 11 : i64} {
  func.func @_expansion_kernel(%arg0: i32, %arg1: memref<1x4x16x16xf32, #tpu.memory_space<vmem>>, %arg2: memref<32x36xbf16, #tpu.memory_space<vmem>>, %arg3: memref<32x1xf32, #tpu.memory_space<vmem>>, %arg4: memref<1x32x256xbf16, #tpu.memory_space<vmem>>) attributes {dimension_semantics = [#tpu.dimension_semantics<parallel>], iteration_bounds = array<i64: 2>, scalar_prefetch = 0 : i64, scratch_operands = 0 : i64, tpu.core_type = #tpu.core_type<tc>, window_params = [{transform_indices = @transform_0, window_bounds = array<i64: 1, 4, 16, 16>}, {pipeline_mode = #tpu.pipeline_mode<synchronous>, transform_indices = @transform_1, window_bounds = array<i64: 32, 36>}, {pipeline_mode = #tpu.pipeline_mode<synchronous>, transform_indices = @transform_2, window_bounds = array<i64: 32, 1>}, {transform_indices = @transform_3, window_bounds = array<i64: 1, 32, 256>}]} {
    %c0 = arith.constant 0 : index
    %c0_0 = arith.constant 0 : index
    %c0_1 = arith.constant 0 : index
    %c0_2 = arith.constant 0 : index
    %0 = vector.load %arg1[%c0, %c0_0, %c0_1, %c0_2] : memref<1x4x16x16xf32, #tpu.memory_space<vmem>>, vector<1x4x16x16xf32>
    %1 = vector.shape_cast %0 : vector<1x4x16x16xf32> to vector<4x16x16xf32>
    %cst = arith.constant 0.000000e+00 : f32
    %2 = vector.broadcast %cst : f32 to vector<4x1x16xf32>
    %3 = tpu.concatenate %2, %1, %2 in 1 : vector<4x1x16xf32>, vector<4x16x16xf32>, vector<4x1x16xf32> -> vector<4x18x16xf32>
    %cst_3 = arith.constant 0.000000e+00 : f32
    %4 = vector.broadcast %cst_3 : f32 to vector<4x18x1xf32>
    %5 = tpu.concatenate %4, %3, %4 in 2 : vector<4x18x1xf32>, vector<4x18x16xf32>, vector<4x18x1xf32> -> vector<4x18x18xf32>
    %6 = arith.truncf %5 : vector<4x18x18xf32> to vector<4x18x18xbf16>
    %7 = vector.extract_strided_slice %6 {offsets = [0, 0, 0], sizes = [4, 16, 16], strides = [1, 1, 1]} : vector<4x18x18xbf16> to vector<4x16x16xbf16>
    %8 = vector.shape_cast %7 : vector<4x16x16xbf16> to vector<4x256xbf16>
    %9 = vector.extract_strided_slice %6 {offsets = [0, 0, 1], sizes = [4, 16, 16], strides = [1, 1, 1]} : vector<4x18x18xbf16> to vector<4x16x16xbf16>
    %10 = vector.shape_cast %9 : vector<4x16x16xbf16> to vector<4x256xbf16>
    %11 = vector.extract_strided_slice %6 {offsets = [0, 0, 2], sizes = [4, 16, 16], strides = [1, 1, 1]} : vector<4x18x18xbf16> to vector<4x16x16xbf16>
    %12 = vector.shape_cast %11 : vector<4x16x16xbf16> to vector<4x256xbf16>
    %13 = vector.extract_strided_slice %6 {offsets = [0, 1, 0], sizes = [4, 16, 16], strides = [1, 1, 1]} : vector<4x18x18xbf16> to vector<4x16x16xbf16>
    %14 = vector.shape_cast %13 : vector<4x16x16xbf16> to vector<4x256xbf16>
    %15 = vector.extract_strided_slice %6 {offsets = [0, 1, 1], sizes = [4, 16, 16], strides = [1, 1, 1]} : vector<4x18x18xbf16> to vector<4x16x16xbf16>
    %16 = vector.shape_cast %15 : vector<4x16x16xbf16> to vector<4x256xbf16>
    %17 = vector.extract_strided_slice %6 {offsets = [0, 1, 2], sizes = [4, 16, 16], strides = [1, 1, 1]} : vector<4x18x18xbf16> to vector<4x16x16xbf16>
    %18 = vector.shape_cast %17 : vector<4x16x16xbf16> to vector<4x256xbf16>
    %19 = vector.extract_strided_slice %6 {offsets = [0, 2, 0], sizes = [4, 16, 16], strides = [1, 1, 1]} : vector<4x18x18xbf16> to vector<4x16x16xbf16>
    %20 = vector.shape_cast %19 : vector<4x16x16xbf16> to vector<4x256xbf16>
    %21 = vector.extract_strided_slice %6 {offsets = [0, 2, 1], sizes = [4, 16, 16], strides = [1, 1, 1]} : vector<4x18x18xbf16> to vector<4x16x16xbf16>
    %22 = vector.shape_cast %21 : vector<4x16x16xbf16> to vector<4x256xbf16>
    %23 = vector.extract_strided_slice %6 {offsets = [0, 2, 2], sizes = [4, 16, 16], strides = [1, 1, 1]} : vector<4x18x18xbf16> to vector<4x16x16xbf16>
    %24 = vector.shape_cast %23 : vector<4x16x16xbf16> to vector<4x256xbf16>
    %25 = tpu.concatenate %8, %10, %12, %14, %16, %18, %20, %22, %24 in 0 : vector<4x256xbf16>, vector<4x256xbf16>, vector<4x256xbf16>, vector<4x256xbf16>, vector<4x256xbf16>, vector<4x256xbf16>, vector<4x256xbf16>, vector<4x256xbf16>, vector<4x256xbf16> -> vector<36x256xbf16>
    %c0_4 = arith.constant 0 : index
    %c0_5 = arith.constant 0 : index
    %26 = vector.load %arg2[%c0_4, %c0_5] : memref<32x36xbf16, #tpu.memory_space<vmem>>, vector<32x36xbf16>
    %cst_6 = arith.constant dense<0.000000e+00> : vector<32x256xf32>
    %27 = tpu.matmul %26, %25, %cst_6 {dimension_numbers = #tpu.dot_dimension_numbers<[1], [0], [0], [1], [0, 0, 1, 1], [], []>} : vector<32x36xbf16>, vector<36x256xbf16>, vector<32x256xf32> -> vector<32x256xf32>
    %c0_7 = arith.constant 0 : index
    %c0_8 = arith.constant 0 : index
    %28 = vector.load %arg3[%c0_7, %c0_8] : memref<32x1xf32, #tpu.memory_space<vmem>>, vector<32x1xf32>
    %29 = vector.broadcast %28 : vector<32x1xf32> to vector<32x256xf32>
    %30 = arith.addf %27, %29 : vector<32x256xf32>
    %cst_9 = arith.constant 0.000000e+00 : f32
    %31 = vector.broadcast %cst_9 : f32 to vector<32x256xf32>
    %32 = arith.maximumf %30, %31 : vector<32x256xf32>
    %33 = arith.truncf %32 : vector<32x256xf32> to vector<32x256xbf16>
    %c0_10 = arith.constant 0 : index
    %c0_11 = arith.constant 0 : index
    %c0_12 = arith.constant 0 : index
    %34 = vector.load %arg4[%c0_10, %c0_11, %c0_12] : memref<1x32x256xbf16, #tpu.memory_space<vmem>>, vector<1x32x256xbf16>
    %35 = vector.shape_cast %34 : vector<1x32x256xbf16> to vector<32x256xbf16>
    %36 = vector.shape_cast %33 : vector<32x256xbf16> to vector<1x32x256xbf16>
    tpu.vector_store %arg4[%c0_10, %c0_11, %c0_12], %36 {strides = array<i32>} : memref<1x32x256xbf16, #tpu.memory_space<vmem>>, vector<1x32x256xbf16>,
    return
  }
  func.func @transform_0(%arg0: i32) -> (i32, i32, i32, i32) {
    %c0_i32 = arith.constant 0 : i32
    %c0_i32_0 = arith.constant 0 : i32
    %c0_i32_1 = arith.constant 0 : i32
    %c0_i32_2 = arith.constant 0 : i32
    return %arg0, %c0_i32, %c0_i32_0, %c0_i32_1 : i32, i32, i32, i32
  }
  func.func @transform_1(%arg0: i32) -> (i32, i32) {
    %c0_i32 = arith.constant 0 : i32
    %c0_i32_0 = arith.constant 0 : i32
    %c0_i32_1 = arith.constant 0 : i32
    return %c0_i32, %c0_i32_0 : i32, i32
  }
  func.func @transform_2(%arg0: i32) -> (i32, i32) {
    %c0_i32 = arith.constant 0 : i32
    %c0_i32_0 = arith.constant 0 : i32
    %c0_i32_1 = arith.constant 0 : i32
    return %c0_i32, %c0_i32_0 : i32, i32
  }
  func.func @transform_3(%arg0: i32) -> (i32, i32, i32) {
    %c0_i32 = arith.constant 0 : i32
    %c0_i32_0 = arith.constant 0 : i32
    %c0_i32_1 = arith.constant 0 : i32
    return %arg0, %c0_i32, %c0_i32_0 : i32, i32, i32
  }
}

</mosaic_0001>

<llo_original>
// kernel: tpu_custom_call.1
$region0: #{tpu_custom_call.1}
  #allocation0 [shape = 'u32[]', space=smem, size = 0x4, offset = 0x4, fixed_abs, tag = 'smem constant byte address 0x4 - core index']
  #allocation1 [shape = 'u32[144,128]{1,0:T(1,128)}', space=vmem, size = 0x12000, scoped, tag = 'internal scratch']
  %s0 = inlined_call_operand.hbm [shape: f32[2,4,16,16], index: 0, kind: input, shape index: {}]
  %s1 = inlined_call_operand.vmem [shape: bf16[32,36], index: 1, kind: input, shape index: {}]
  %s2 = inlined_call_operand.vmem [shape: f32[32,1], index: 2, kind: input, shape index: {}]
  %s3 = inlined_call_operand.hbm [shape: bf16[2,32,256], index: 3, kind: output, shape index: {}]
  %s4 = sld [smem:[#allocation0]]
  $region49: #{tpu_custom_call.1} parent=0
    _
  %s6 = ssub.s32 1, %s4
  %s7 = scalar_select 0, %s6, %s4
  $region1: #{tpu_custom_call.1} parent=0
    #allocation2 [shape = 'u8[65536]{0}', space=vmem, size = 0x10000, scoped, tag = 'input window, operand 0']
    #allocation3 [shape = 's32[2]{0}', space=sflag, size = 0x8, scoped, tag = 'scoped memory for tpu_custom_call.1']
    #allocation4 [shape = 's32[2]{0}', space=sflag, size = 0x8, scoped, tag = 'scoped memory for tpu_custom_call.1']
    #allocation5 [shape = 'u8[32768]{0}', space=vmem, size = 0x8000, scoped, tag = 'output window, operand 0']
    %8 = vsyncpa [#allocation3], 0
    %s9 = scalar_lea.sflag [#allocation3], 1
    %10 = vsyncpa %s9, 0
    %11 = vsyncpa [#allocation4], 0
    %s12 = scalar_lea.sflag [#allocation4], 1
    %13 = vsyncpa %s12, 0
    loop: start=0, step=1, limit=4
    $region2: #{tpu_custom_call.1} parent=1 // loop_pre_header
      _
    $region3: #{tpu_custom_call.1} parent=1 // loop_header
      %s15 = sphi 0, %s19
      %p16 = scmp.ge.s32.totalorder %s15, 4
      %s25 = sphi 0, %s27
      %s28 = sphi 0, %s25
      %s29 = sphi 0, %s28
      %s45 = sphi 0, %s29
      %s49 = sphi 0, %s49
      %s51 = sphi 0, %s49
      %s52 = sphi 0, %s51
      %s66 = sphi 0, %s52
      %s70 = sphi 0, %s70
      %s72 = sphi 0, %s70
      %s73 = sphi 0, %s72
      %s87 = sphi 0, %s73
      %s93 = sphi 0, %s95
      %s96 = sphi 0, %s93
      %s97 = sphi 0, %s96
      %s113 = sphi 0, %s97
    $region4: #{tpu_custom_call.1} parent=1 // loop_header_branch
      %18 = sbr.rel (%p16) target = $region8
    $region5: #{tpu_custom_call.1} parent=1 // loop_body
      %s20 = ssub.s32 %s15, 1
      %s21 = ssub.s32 %s15, 2
      %s22 = sadd.s32 %s15, 1
      %s23 = ssub.s32 %s15, %s22
      %p24 = scmp.eq.s32.totalorder %s23, 0
      %s26 = sadd.s32 %s25, 1
      %s27 = scalar_select %p24, %s25, %s26
      %p30 = pneg %p24
      %p31 = scmp.eq.s32.totalorder %s15, 1
      %p32 = por %p30, %p31
      %p33 = scmp.ne.s32.totalorder %s25, %s28
      %p34 = scmp.eq.s32.totalorder %s15, 0
      %p35 = por %p33, %p34
      %p36 = scmp.ne.s32.totalorder %s25, %s28
      %p37 = scmp.eq.s32.totalorder %s20, 1
      %p38 = por %p36, %p37
      %p39 = scmp.ne.s32.totalorder %s28, %s29
      %p40 = scmp.eq.s32.totalorder %s20, 0
      %p41 = por %p39, %p40
      %p42 = scmp.ne.s32.totalorder %s28, %s29
      %p43 = scmp.eq.s32.totalorder %s21, 1
      %p44 = por %p42, %p43
      %p46 = scmp.ne.s32.totalorder %s29, %s45
      %p47 = scmp.eq.s32.totalorder %s21, 0
      %p48 = por %p46, %p47
      %s50 = sadd.s32 %s49, 1
      %p53 = scmp.eq.s32.totalorder %s15, 1
      %p54 = scmp.ne.s32.totalorder %s49, %s51
      %p55 = scmp.eq.s32.totalorder %s15, 0
      %p56 = por %p54, %p55
      %p57 = scmp.ne.s32.totalorder %s49, %s51
      %p58 = scmp.eq.s32.totalorder %s20, 1
      %p59 = por %p57, %p58
      %p60 = scmp.ne.s32.totalorder %s51, %s52
      %p61 = scmp.eq.s32.totalorder %s20, 0
      %p62 = por %p60, %p61
      %p63 = scmp.ne.s32.totalorder %s51, %s52
      %p64 = scmp.eq.s32.totalorder %s21, 1
      %p65 = por %p63, %p64
      %p67 = scmp.ne.s32.totalorder %s52, %s66
      %p68 = scmp.eq.s32.totalorder %s21, 0
      %p69 = por %p67, %p68
      %s71 = sadd.s32 %s70, 1
      %p74 = scmp.eq.s32.totalorder %s15, 1
      %p75 = scmp.ne.s32.totalorder %s70, %s72
      %p76 = scmp.eq.s32.totalorder %s15, 0
      %p77 = por %p75, %p76
      %p78 = scmp.ne.s32.totalorder %s70, %s72
      %p79 = scmp.eq.s32.totalorder %s20, 1
      %p80 = por %p78, %p79
      %p81 = scmp.ne.s32.totalorder %s72, %s73
      %p82 = scmp.eq.s32.totalorder %s20, 0
      %p83 = por %p81, %p82
      %p84 = scmp.ne.s32.totalorder %s72, %s73
      %p85 = scmp.eq.s32.totalorder %s21, 1
      %p86 = por %p84, %p85
      %p88 = scmp.ne.s32.totalorder %s73, %s87
      %p89 = scmp.eq.s32.totalorder %s21, 0
      %p90 = por %p88, %p89
      %s91 = ssub.s32 %s15, %s22
      %p92 = scmp.eq.s32.totalorder %s91, 0
      %s94 = sadd.s32 %s93, 1
      %s95 = scalar_select %p92, %s93, %s94
      %p98 = pneg %p92
      %p99 = scmp.eq.s32.totalorder %s15, 1
      %p100 = por %p98, %p99
      %p101 = scmp.ne.s32.totalorder %s93, %s96
      %p102 = scmp.eq.s32.totalorder %s15, 0
      %p103 = por %p101, %p102
      %p104 = scmp.ne.s32.totalorder %s93, %s96
      %p105 = scmp.eq.s32.totalorder %s20, 1
      %p106 = por %p104, %p105
      %p107 = scmp.ne.s32.totalorder %s96, %s97
      %p108 = scmp.eq.s32.totalorder %s20, 0
      %p109 = por %p107, %p108
      %p110 = scmp.ne.s32.totalorder %s96, %s97
      %p111 = scmp.eq.s32.totalorder %s21, 1
      %p112 = por %p110, %p111
      %p114 = scmp.ne.s32.totalorder %s97, %s113
      %p115 = scmp.eq.s32.totalorder %s21, 0
      %p116 = por %p114, %p115
      %p117 = scmp.le.s32.totalorder 1, %s15
      %p118 = scmp.lt.s32.totalorder %s15, 3
      %p119 = pnand %p117, %p118
      %p120 = pneg %p119
      // Predicated region
      $region9: #{tpu_custom_call.1} parent=5 // pred_check
        _
      $region10: #{tpu_custom_call.1} parent=5 // pred_check_branch
        %122 = sbr.rel (%p119) target = $region12
      $region11: #{tpu_custom_call.1} parent=5 // pred_region
        %s123 = ssub.s32 %s15, 1
        // Predicated region
        $region13: #{tpu_custom_call.1} parent=11 // pred_check
          %p124 = pneg %p62
        $region14: #{tpu_custom_call.1} parent=11 // pred_check_branch
          %126 = sbr.rel (%p124) target = $region16
        $region15: #{tpu_custom_call.1} parent=11 // pred_region
          _
        $region16: #{tpu_custom_call.1} parent=11 // pred_fallthru
          _
        // Predicated region
        $region17: #{tpu_custom_call.1} parent=11 // pred_check
          %p127 = pneg %p83
        $region18: #{tpu_custom_call.1} parent=11 // pred_check_branch
          %129 = sbr.rel (%p127) target = $region20
        $region19: #{tpu_custom_call.1} parent=11 // pred_region
          _
        $region20: #{tpu_custom_call.1} parent=11 // pred_fallthru
          _
      $region12: #{tpu_custom_call.1} parent=5 // pred_fallthru
        _
      %p130 = scmp.lt.s32.totalorder %s15, 2
      // Predicated region
      $region21: #{tpu_custom_call.1} parent=5 // pred_check
        %p131 = pneg %p130
      $region22: #{tpu_custom_call.1} parent=5 // pred_check_branch
        %133 = sbr.rel (%p131) target = $region24
      $region23: #{tpu_custom_call.1} parent=5 // pred_region
        // Predicated region
        $region25: #{tpu_custom_call.1} parent=23 // pred_check
          %p134 = pneg %p35
        $region26: #{tpu_custom_call.1} parent=23 // pred_check_branch
          %136 = sbr.rel (%p134) target = $region28
        $region27: #{tpu_custom_call.1} parent=23 // pred_region
          %s137 = sand.u32 %s25, 1
          %s138 = scalar_lea.sflag [#allocation3], %s137
          %s139 = sand.u32 %s25, 1
          %s140 = smul.addr %s139, 64
          %s141 = scalar_lea.vmem [#allocation2], %s140
          %s143 = ssub.s32 1024, 1024
          %144 = vsyncadd %s138, %s143
          %s145 = smul.addr %s15, 8
          %s146 = smul.addr %s145, 128
          %s147 = scalar_lea.hbm %s0, %s146
          %s148 = sshll.u32 %s141, 4
          %s149 = int_to_ptr.vmem [resolvable:$true] %s148
          %154 = dma.hbm_to_vmem [thread:$0]  %s147, 1024, %s149, %s138, 128, 128, 8
        $region28: #{tpu_custom_call.1} parent=23 // pred_fallthru
          _
      $region24: #{tpu_custom_call.1} parent=5 // pred_fallthru
        _
      %p155 = scmp.le.s32.totalorder 1, %s15
      %p156 = scmp.lt.s32.totalorder %s15, 3
      %p157 = pnand %p155, %p156
      %p158 = pneg %p157
      // Predicated region
      $region29: #{tpu_custom_call.1} parent=5 // pred_check
        _
      $region30: #{tpu_custom_call.1} parent=5 // pred_check_branch
        %160 = sbr.rel (%p157) target = $region32
      $region31: #{tpu_custom_call.1} parent=5 // pred_region
        %s161 = ssub.s32 %s15, 1
        %s162 = sand.u32 %s28, 1
        %s163 = scalar_lea.sflag [#allocation3], %s162
        %s164 = sand.u32 %s28, 1
        %s165 = smul.addr %s164, 64
        %s166 = scalar_lea.vmem [#allocation2], %s165
        // Predicated region
        $region33: #{tpu_custom_call.1} parent=31 // pred_check
          %p167 = pneg %p41
        $region34: #{tpu_custom_call.1} parent=31 // pred_check_branch
          %169 = sbr.rel (%p167) target = $region36
        $region35: #{tpu_custom_call.1} parent=31 // pred_region
          %170 = dma.done %s163, 1024
        $region36: #{tpu_custom_call.1} parent=31 // pred_fallthru
          _
        %s171 = sand.u32 %s28, 1
        %s172 = scalar_lea.sflag [#allocation3], %s171
        %s173 = sand.u32 %s28, 1
        %s174 = smul.addr %s173, 64
        %s175 = scalar_lea.vmem [#allocation2], %s174
        %p176 = pneg %p41
        %p177 = pneg %p38
        %p178 = pneg %p62
        %p179 = pneg %p59
        %p180 = pneg %p83
        %p181 = pneg %p80
        %p182 = pneg %p109
        %p183 = pneg %p106
        %s184 = sand.u32 %s96, 1
        %s185 = scalar_lea.sflag [#allocation4], %s184
        %s186 = sand.u32 %s96, 1
        %s187 = smul.addr %s186, 32
        %s188 = scalar_lea.vmem [#allocation5], %s187
        %v190 = vld [vmem:[%s166] sm:$0xff]
        %v191 = vld [vmem:[%s166 + $0x8] sm:$0xff]
        %v192 = vld [vmem:[%s166 + $0x10] sm:$0xff]
        %v193 = vld [vmem:[%s166 + $0x18] sm:$0xff]
        %v194 = vld [vmem:[%s166 + $0x20] sm:$0xff]
        %v195 = vld [vmem:[%s166 + $0x28] sm:$0xff]
        %v196 = vld [vmem:[%s166 + $0x30] sm:$0xff]
        %v197 = vld [vmem:[%s166 + $0x38] sm:$0xff]
        %vm206 = vcmask 1040384
        %v207 = vrot.slane %v190, 7
        %v208 = vrot.slane %v191, 7
        %v209 = vsel %vm206, %v207, %v208
        %v210 = vrot.slane %v192, 7
        %v211 = vrot.slane %v193, 7
        %v212 = vsel %vm206, %v210, %v211
        %v213 = vrot.slane %v194, 7
        %v214 = vrot.slane %v195, 7
        %v215 = vsel %vm206, %v213, %v214
        %v216 = vrot.slane %v196, 7
        %v217 = vrot.slane %v197, 7
        %v218 = vsel %vm206, %v216, %v217
        %v227 = vsel %vm206, 0.0, %v207
        %v228 = vsel %vm206, 0.0, %v210
        %v229 = vsel %vm206, 0.0, %v213
        %v230 = vsel %vm206, 0.0, %v216
        %v231 = vsel %vm206, %v208, 0.0
        %v232 = vsel %vm206, %v211, 0.0
        %v233 = vsel %vm206, %v214, 0.0
        %v234 = vsel %vm206, %v217, 0.0
        %243 = vrot.lane.b32.xlu0 %v227, 1
        %v244 = vpop.permute.xlu0 %243
        %245 = vrot.lane.b32.xlu0 %v209, 1
        %v246 = vpop.permute.xlu0 %245
        %247 = vrot.lane.b32.xlu0 %v231, 1
        %v248 = vpop.permute.xlu0 %247
        %249 = vrot.lane.b32.xlu0 %v228, 1
        %v250 = vpop.permute.xlu0 %249
        %251 = vrot.lane.b32.xlu0 %v212, 1
        %v252 = vpop.permute.xlu0 %251
        %253 = vrot.lane.b32.xlu0 %v232, 1
        %v254 = vpop.permute.xlu0 %253
        %255 = vrot.lane.b32.xlu0 %v229, 1
        %v256 = vpop.permute.xlu0 %255
        %257 = vrot.lane.b32.xlu0 %v215, 1
        %v258 = vpop.permute.xlu0 %257
        %259 = vrot.lane.b32.xlu0 %v233, 1
        %v260 = vpop.permute.xlu0 %259
        %261 = vrot.lane.b32.xlu0 %v230, 1
        %v262 = vpop.permute.xlu0 %261
        %263 = vrot.lane.b32.xlu0 %v218, 1
        %v264 = vpop.permute.xlu0 %263
        %265 = vrot.lane.b32.xlu0 %v234, 1
        %v266 = vpop.permute.xlu0 %265
        %vm279 = vcmask 7168
        %v280 = vsel %vm279, 0.0, %v244
        %v281 = vsel %vm279, 0.0, %v246
        %v282 = vsel %vm279, 0.0, %v248
        %v283 = vsel %vm279, 0.0, %v250
        %v284 = vsel %vm279, 0.0, %v252
        %v285 = vsel %vm279, 0.0, %v254
        %v286 = vsel %vm279, 0.0, %v256
        %v287 = vsel %vm279, 0.0, %v258
        %v288 = vsel %vm279, 0.0, %v260
        %v289 = vsel %vm279, 0.0, %v262
        %v290 = vsel %vm279, 0.0, %v264
        %v291 = vsel %vm279, 0.0, %v266
        %vm292 = vcmask 138240
        %v293 = vsel %vm292, %v280, 0.0
        %v294 = vsel %vm292, %v281, 0.0
        %v295 = vsel %vm292, %v282, 0.0
        %v296 = vsel %vm292, %v283, 0.0
        %v297 = vsel %vm292, %v284, 0.0
        %v298 = vsel %vm292, %v285, 0.0
        %v299 = vsel %vm292, %v286, 0.0
        %v300 = vsel %vm292, %v287, 0.0
        %v301 = vsel %vm292, %v288, 0.0
        %v302 = vsel %vm292, %v289, 0.0
        %v303 = vsel %vm292, %v290, 0.0
        %v304 = vsel %vm292, %v291, 0.0
        %v305 = vpack.c.bf16 %v294, %v293
        %v306 = vpack.c.bf16 %v295, %v295
        %v307 = vpack.c.bf16 %v297, %v296
        %v308 = vpack.c.bf16 %v298, %v298
        %v309 = vpack.c.bf16 %v300, %v299
        %v310 = vpack.c.bf16 %v301, %v301
        %v311 = vpack.c.bf16 %v303, %v302
        %v312 = vpack.c.bf16 %v304, %v304
        %v315 = vpack.i.b16 %v307, %v305
        %v317 = vshrl.u32 %v305, 16
        %v318 = vshrl.u32 %v307, 16
        %v319 = vpack.i.b16 %v318, %v317
        %v323 = vpack.i.b16 %v311, %v309
        %v325 = vshrl.u32 %v309, 16
        %v326 = vshrl.u32 %v311, 16
        %v327 = vpack.i.b16 %v326, %v325
        %v330 = vpack.i.b16 0, 0
        %v332 = vshrl.u32 0, 16
        %v333 = vpack.i.b16 %v332, %v332
        %v335 = vcombine.high %v315, %v330
        %v337 = vunpack.c.l.s4 1983009808
        %v338 = vunpack.c.0.s8 %v337
        %v339 = vlaneseq
        %v340 = vshrl.u32 %v339, 7
        %v341 = vsub.s32 %v338, %v340
        %v342 = vrot.slane %v315, %v341
        %v344 = vunpack.c.l.s4 1983009808
        %v345 = vunpack.c.0.s8 %v344
        %v346 = vlaneseq
        %v347 = vshrl.u32 %v346, 7
        %v348 = vsub.s32 %v345, %v347
        %v349 = vrot.slane %v335, %v348
        %v350 = vcombine.high %v323, %v330
        %v352 = vunpack.c.l.s4 1983009808
        %v353 = vunpack.c.0.s8 %v352
        %v354 = vlaneseq
        %v355 = vshrl.u32 %v354, 7
        %v356 = vsub.s32 %v353, %v355
        %v357 = vrot.slane %v323, %v356
        %v359 = vunpack.c.l.s4 1983009808
        %v360 = vunpack.c.0.s8 %v359
        %v361 = vlaneseq
        %v362 = vshrl.u32 %v361, 7
        %v363 = vsub.s32 %v360, %v362
        %v364 = vrot.slane %v350, %v363
        %v365 = vcombine.low %v342, %v357
        %v366 = vcombine.high %v342, %v357
        %v368 = vunpack.c.l.s4 1934713408
        %v369 = vunpack.c.0.s8 %v368
        %v370 = vlaneseq
        %v371 = vshrl.u32 %v370, 7
        %v372 = vsub.s32 %v369, %v371
        %v373 = vrot.slane %v365, %v372
        %v375 = vunpack.c.l.s4 1934713408
        %v376 = vunpack.c.0.s8 %v375
        %v377 = vlaneseq
        %v378 = vshrl.u32 %v377, 7
        %v379 = vsub.s32 %v376, %v378
        %v380 = vrot.slane %v366, %v379
        %v381 = vcombine.low %v349, %v364
        %v382 = vcombine.high %v349, %v364
        %v384 = vunpack.c.l.s4 1934713408
        %v385 = vunpack.c.0.s8 %v384
        %v386 = vlaneseq
        %v387 = vshrl.u32 %v386, 7
        %v388 = vsub.s32 %v385, %v387
        %v389 = vrot.slane %v381, %v388
        %v391 = vunpack.c.l.s4 1934713408
        %v392 = vunpack.c.0.s8 %v391
        %v393 = vlaneseq
        %v394 = vshrl.u32 %v393, 7
        %v395 = vsub.s32 %v392, %v394
        %v396 = vrot.slane %v382, %v395
        %v397 = vcombine.high %v373, 0
        %v398 = vcombine.high %v380, 0
        %v399 = vcombine.high %v389, 0
        %v400 = vcombine.high %v396, 0
        %v401 = vcombine.high %v319, %v333
        %v403 = vunpack.c.l.s4 1983009808
        %v404 = vunpack.c.0.s8 %v403
        %v405 = vlaneseq
        %v406 = vshrl.u32 %v405, 7
        %v407 = vsub.s32 %v404, %v406
        %v408 = vrot.slane %v319, %v407
        %v410 = vunpack.c.l.s4 1983009808
        %v411 = vunpack.c.0.s8 %v410
        %v412 = vlaneseq
        %v413 = vshrl.u32 %v412, 7
        %v414 = vsub.s32 %v411, %v413
        %v415 = vrot.slane %v401, %v414
        %v416 = vcombine.high %v327, %v333
        %v418 = vunpack.c.l.s4 1983009808
        %v419 = vunpack.c.0.s8 %v418
        %v420 = vlaneseq
        %v421 = vshrl.u32 %v420, 7
        %v422 = vsub.s32 %v419, %v421
        %v423 = vrot.slane %v327, %v422
        %v425 = vunpack.c.l.s4 1983009808
        %v426 = vunpack.c.0.s8 %v425
        %v427 = vlaneseq
        %v428 = vshrl.u32 %v427, 7
        %v429 = vsub.s32 %v426, %v428
        %v430 = vrot.slane %v416, %v429
        %v431 = vcombine.low %v408, %v423
        %v432 = vcombine.high %v408, %v423
        %v434 = vunpack.c.l.s4 1934713408
        %v435 = vunpack.c.0.s8 %v434
        %v436 = vlaneseq
        %v437 = vshrl.u32 %v436, 7
        %v438 = vsub.s32 %v435, %v437
        %v439 = vrot.slane %v431, %v438
        %v441 = vunpack.c.l.s4 1934713408
        %v442 = vunpack.c.0.s8 %v441
        %v443 = vlaneseq
        %v444 = vshrl.u32 %v443, 7
        %v445 = vsub.s32 %v442, %v444
        %v446 = vrot.slane %v432, %v445
        %v447 = vcombine.low %v415, %v430
        %v448 = vcombine.high %v415, %v430
        %v450 = vunpack.c.l.s4 1934713408
        %v451 = vunpack.c.0.s8 %v450
        %v452 = vlaneseq
        %v453 = vshrl.u32 %v452, 7
        %v454 = vsub.s32 %v451, %v453
        %v455 = vrot.slane %v447, %v454
        %v457 = vunpack.c.l.s4 1934713408
        %v458 = vunpack.c.0.s8 %v457
        %v459 = vlaneseq
        %v460 = vshrl.u32 %v459, 7
        %v461 = vsub.s32 %v458, %v460
        %v462 = vrot.slane %v448, %v461
        %v463 = vcombine.high %v439, 0
        %v464 = vcombine.high %v446, 0
        %v465 = vcombine.high %v455, 0
        %v466 = vcombine.high %v462, 0
        %468 = vrot.lane.b32.xlu0 %v439, 16
        %v469 = vpop.permute.xlu0 %468
        %471 = vrot.lane.b32.xlu0 %v397, 32
        %v472 = vpop.permute.xlu0 %471
        %474 = vrot.lane.b32.xlu0 %v463, 48
        %v475 = vpop.permute.xlu0 %474
        %477 = vrot.lane.b32.xlu0 %v380, 64
        %v478 = vpop.permute.xlu0 %477
        %480 = vrot.lane.b32.xlu0 %v446, 80
        %v481 = vpop.permute.xlu0 %480
        %483 = vrot.lane.b32.xlu0 %v398, 96
        %v484 = vpop.permute.xlu0 %483
        %486 = vrot.lane.b32.xlu0 %v464, 112
        %v487 = vpop.permute.xlu0 %486
        %489 = vrot.lane.b32.xlu0 %v455, 16
        %v490 = vpop.permute.xlu0 %489
        %492 = vrot.lane.b32.xlu0 %v399, 32
        %v493 = vpop.permute.xlu0 %492
        %495 = vrot.lane.b32.xlu0 %v465, 48
        %v496 = vpop.permute.xlu0 %495
        %498 = vrot.lane.b32.xlu0 %v396, 64
        %v499 = vpop.permute.xlu0 %498
        %501 = vrot.lane.b32.xlu0 %v462, 80
        %v502 = vpop.permute.xlu0 %501
        %504 = vrot.lane.b32.xlu0 %v400, 96
        %v505 = vpop.permute.xlu0 %504
        %507 = vrot.lane.b32.xlu0 %v466, 112
        %v508 = vpop.permute.xlu0 %507
        %vm509 = vcmask 130048
        %v512 = vsel %vm509, %v373, %v469
        %vm513 = vcmask 261120
        %v515 = vsel %vm513, %v512, %v472
        %vm516 = vcmask 392192
        %v518 = vsel %vm516, %v515, %v475
        %vm519 = vcmask 523264
        %v521 = vsel %vm519, %v518, %v478
        %vm522 = vcmask 654336
        %v524 = vsel %vm522, %v521, %v481
        %vm525 = vcmask 785408
        %v527 = vsel %vm525, %v524, %v484
        %vm528 = vcmask 916480
        %v530 = vsel %vm528, %v527, %v487
        %v533 = vsel %vm509, %v389, %v490
        %v535 = vsel %vm513, %v533, %v493
        %v537 = vsel %vm516, %v535, %v496
        %v539 = vsel %vm519, %v537, %v499
        %v541 = vsel %vm522, %v539, %v502
        %v543 = vsel %vm525, %v541, %v505
        %v545 = vsel %vm528, %v543, %v508
        %550 = vrot.lane.b32.xlu0 %v305, 127
        %v551 = vpop.permute.xlu0 %550
        %552 = vrot.lane.b32.xlu0 %v307, 127
        %v553 = vpop.permute.xlu0 %552
        %554 = vrot.lane.b32.xlu0 %v309, 127
        %v555 = vpop.permute.xlu0 %554
        %556 = vrot.lane.b32.xlu0 %v311, 127
        %v557 = vpop.permute.xlu0 %556
        %v560 = vpack.i.b16 %v553, %v551
        %v562 = vshrl.u32 %v551, 16
        %v563 = vshrl.u32 %v553, 16
        %v564 = vpack.i.b16 %v563, %v562
        %v568 = vpack.i.b16 %v557, %v555
        %v570 = vshrl.u32 %v555, 16
        %v571 = vshrl.u32 %v557, 16
        %v572 = vpack.i.b16 %v571, %v570
        %v574 = vcombine.high %v560, %v330
        %v576 = vunpack.c.l.s4 1983009808
        %v577 = vunpack.c.0.s8 %v576
        %v578 = vlaneseq
        %v579 = vshrl.u32 %v578, 7
        %v580 = vsub.s32 %v577, %v579
        %v581 = vrot.slane %v560, %v580
        %v583 = vunpack.c.l.s4 1983009808
        %v584 = vunpack.c.0.s8 %v583
        %v585 = vlaneseq
        %v586 = vshrl.u32 %v585, 7
        %v587 = vsub.s32 %v584, %v586
        %v588 = vrot.slane %v574, %v587
        %v589 = vcombine.high %v568, %v330
        %v591 = vunpack.c.l.s4 1983009808
        %v592 = vunpack.c.0.s8 %v591
        %v593 = vlaneseq
        %v594 = vshrl.u32 %v593, 7
        %v595 = vsub.s32 %v592, %v594
        %v596 = vrot.slane %v568, %v595
        %v598 = vunpack.c.l.s4 1983009808
        %v599 = vunpack.c.0.s8 %v598
        %v600 = vlaneseq
        %v601 = vshrl.u32 %v600, 7
        %v602 = vsub.s32 %v599, %v601
        %v603 = vrot.slane %v589, %v602
        %v604 = vcombine.low %v581, %v596
        %v605 = vcombine.high %v581, %v596
        %v607 = vunpack.c.l.s4 1934713408
        %v608 = vunpack.c.0.s8 %v607
        %v609 = vlaneseq
        %v610 = vshrl.u32 %v609, 7
        %v611 = vsub.s32 %v608, %v610
        %v612 = vrot.slane %v604, %v611
        %v614 = vunpack.c.l.s4 1934713408
        %v615 = vunpack.c.0.s8 %v614
        %v616 = vlaneseq
        %v617 = vshrl.u32 %v616, 7
        %v618 = vsub.s32 %v615, %v617
        %v619 = vrot.slane %v605, %v618
        %v620 = vcombine.low %v588, %v603
        %v621 = vcombine.high %v588, %v603
        %v623 = vunpack.c.l.s4 1934713408
        %v624 = vunpack.c.0.s8 %v623
        %v625 = vlaneseq
        %v626 = vshrl.u32 %v625, 7
        %v627 = vsub.s32 %v624, %v626
        %v628 = vrot.slane %v620, %v627
        %v630 = vunpack.c.l.s4 1934713408
        %v631 = vunpack.c.0.s8 %v630
        %v632 = vlaneseq
        %v633 = vshrl.u32 %v632, 7
        %v634 = vsub.s32 %v631, %v633
        %v635 = vrot.slane %v621, %v634
        %v636 = vcombine.high %v612, 0
        %v637 = vcombine.high %v619, 0
        %v638 = vcombine.high %v628, 0
        %v639 = vcombine.high %v635, 0
        %v640 = vcombine.high %v564, %v333
        %v642 = vunpack.c.l.s4 1983009808
        %v643 = vunpack.c.0.s8 %v642
        %v644 = vlaneseq
        %v645 = vshrl.u32 %v644, 7
        %v646 = vsub.s32 %v643, %v645
        %v647 = vrot.slane %v564, %v646
        %v649 = vunpack.c.l.s4 1983009808
        %v650 = vunpack.c.0.s8 %v649
        %v651 = vlaneseq
        %v652 = vshrl.u32 %v651, 7
        %v653 = vsub.s32 %v650, %v652
        %v654 = vrot.slane %v640, %v653
        %v655 = vcombine.high %v572, %v333
        %v657 = vunpack.c.l.s4 1983009808
        %v658 = vunpack.c.0.s8 %v657
        %v659 = vlaneseq
        %v660 = vshrl.u32 %v659, 7
        %v661 = vsub.s32 %v658, %v660
        %v662 = vrot.slane %v572, %v661
        %v664 = vunpack.c.l.s4 1983009808
        %v665 = vunpack.c.0.s8 %v664
        %v666 = vlaneseq
        %v667 = vshrl.u32 %v666, 7
        %v668 = vsub.s32 %v665, %v667
        %v669 = vrot.slane %v655, %v668
        %v670 = vcombine.low %v647, %v662
        %v671 = vcombine.high %v647, %v662
        %v673 = vunpack.c.l.s4 1934713408
        %v674 = vunpack.c.0.s8 %v673
        %v675 = vlaneseq
        %v676 = vshrl.u32 %v675, 7
        %v677 = vsub.s32 %v674, %v676
        %v678 = vrot.slane %v670, %v677
        %v680 = vunpack.c.l.s4 1934713408
        %v681 = vunpack.c.0.s8 %v680
        %v682 = vlaneseq
        %v683 = vshrl.u32 %v682, 7
        %v684 = vsub.s32 %v681, %v683
        %v685 = vrot.slane %v671, %v684
        %v686 = vcombine.low %v654, %v669
        %v687 = vcombine.high %v654, %v669
        %v689 = vunpack.c.l.s4 1934713408
        %v690 = vunpack.c.0.s8 %v689
        %v691 = vlaneseq
        %v692 = vshrl.u32 %v691, 7
        %v693 = vsub.s32 %v690, %v692
        %v694 = vrot.slane %v686, %v693
        %v696 = vunpack.c.l.s4 1934713408
        %v697 = vunpack.c.0.s8 %v696
        %v698 = vlaneseq
        %v699 = vshrl.u32 %v698, 7
        %v700 = vsub.s32 %v697, %v699
        %v701 = vrot.slane %v687, %v700
        %v702 = vcombine.high %v678, 0
        %v703 = vcombine.high %v685, 0
        %v704 = vcombine.high %v694, 0
        %v705 = vcombine.high %v701, 0
        %707 = vrot.lane.b32.xlu0 %v678, 16
        %v708 = vpop.permute.xlu0 %707
        %710 = vrot.lane.b32.xlu0 %v636, 32
        %v711 = vpop.permute.xlu0 %710
        %713 = vrot.lane.b32.xlu0 %v702, 48
        %v714 = vpop.permute.xlu0 %713
        %716 = vrot.lane.b32.xlu0 %v619, 64
        %v717 = vpop.permute.xlu0 %716
        %719 = vrot.lane.b32.xlu0 %v685, 80
        %v720 = vpop.permute.xlu0 %719
        %722 = vrot.lane.b32.xlu0 %v637, 96
        %v723 = vpop.permute.xlu0 %722
        %725 = vrot.lane.b32.xlu0 %v703, 112
        %v726 = vpop.permute.xlu0 %725
        %728 = vrot.lane.b32.xlu0 %v694, 16
        %v729 = vpop.permute.xlu0 %728
        %731 = vrot.lane.b32.xlu0 %v638, 32
        %v732 = vpop.permute.xlu0 %731
        %734 = vrot.lane.b32.xlu0 %v704, 48
        %v735 = vpop.permute.xlu0 %734
        %737 = vrot.lane.b32.xlu0 %v635, 64
        %v738 = vpop.permute.xlu0 %737
        %740 = vrot.lane.b32.xlu0 %v701, 80
        %v741 = vpop.permute.xlu0 %740
        %743 = vrot.lane.b32.xlu0 %v639, 96
        %v744 = vpop.permute.xlu0 %743
        %746 = vrot.lane.b32.xlu0 %v705, 112
        %v747 = vpop.permute.xlu0 %746
        %v750 = vsel %vm509, %v612, %v708
        %v752 = vsel %vm513, %v750, %v711
        %v754 = vsel %vm516, %v752, %v714
        %v756 = vsel %vm519, %v754, %v717
        %v758 = vsel %vm522, %v756, %v720
        %v760 = vsel %vm525, %v758, %v723
        %v762 = vsel %vm528, %v760, %v726
        %v765 = vsel %vm509, %v628, %v729
        %v767 = vsel %vm513, %v765, %v732
        %v769 = vsel %vm516, %v767, %v735
        %v771 = vsel %vm519, %v769, %v738
        %v773 = vsel %vm522, %v771, %v741
        %v775 = vsel %vm525, %v773, %v744
        %v777 = vsel %vm528, %v775, %v747
        %778 = vrot.lane.b32.xlu0 %v305, 126
        %v779 = vpop.permute.xlu0 %778
        %780 = vrot.lane.b32.xlu0 %v307, 126
        %v781 = vpop.permute.xlu0 %780
        %782 = vrot.lane.b32.xlu0 %v309, 126
        %v783 = vpop.permute.xlu0 %782
        %784 = vrot.lane.b32.xlu0 %v311, 126
        %v785 = vpop.permute.xlu0 %784
        %v788 = vpack.i.b16 %v781, %v779
        %v790 = vshrl.u32 %v779, 16
        %v791 = vshrl.u32 %v781, 16
        %v792 = vpack.i.b16 %v791, %v790
        %v796 = vpack.i.b16 %v785, %v783
        %v798 = vshrl.u32 %v783, 16
        %v799 = vshrl.u32 %v785, 16
        %v800 = vpack.i.b16 %v799, %v798
        %v802 = vcombine.high %v788, %v330
        %v804 = vunpack.c.l.s4 1983009808
        %v805 = vunpack.c.0.s8 %v804
        %v806 = vlaneseq
        %v807 = vshrl.u32 %v806, 7
        %v808 = vsub.s32 %v805, %v807
        %v809 = vrot.slane %v788, %v808
        %v811 = vunpack.c.l.s4 1983009808
        %v812 = vunpack.c.0.s8 %v811
        %v813 = vlaneseq
        %v814 = vshrl.u32 %v813, 7
        %v815 = vsub.s32 %v812, %v814
        %v816 = vrot.slane %v802, %v815
        %v817 = vcombine.high %v796, %v330
        %v819 = vunpack.c.l.s4 1983009808
        %v820 = vunpack.c.0.s8 %v819
        %v821 = vlaneseq
        %v822 = vshrl.u32 %v821, 7
        %v823 = vsub.s32 %v820, %v822
        %v824 = vrot.slane %v796, %v823
        %v826 = vunpack.c.l.s4 1983009808
        %v827 = vunpack.c.0.s8 %v826
        %v828 = vlaneseq
        %v829 = vshrl.u32 %v828, 7
        %v830 = vsub.s32 %v827, %v829
        %v831 = vrot.slane %v817, %v830
        %v832 = vcombine.low %v809, %v824
        %v833 = vcombine.high %v809, %v824
        %v835 = vunpack.c.l.s4 1934713408
        %v836 = vunpack.c.0.s8 %v835
        %v837 = vlaneseq
        %v838 = vshrl.u32 %v837, 7
        %v839 = vsub.s32 %v836, %v838
        %v840 = vrot.slane %v832, %v839
        %v842 = vunpack.c.l.s4 1934713408
        %v843 = vunpack.c.0.s8 %v842
        %v844 = vlaneseq
        %v845 = vshrl.u32 %v844, 7
        %v846 = vsub.s32 %v843, %v845
        %v847 = vrot.slane %v833, %v846
        %v848 = vcombine.low %v816, %v831
        %v849 = vcombine.high %v816, %v831
        %v851 = vunpack.c.l.s4 1934713408
        %v852 = vunpack.c.0.s8 %v851
        %v853 = vlaneseq
        %v854 = vshrl.u32 %v853, 7
        %v855 = vsub.s32 %v852, %v854
        %v856 = vrot.slane %v848, %v855
        %v858 = vunpack.c.l.s4 1934713408
        %v859 = vunpack.c.0.s8 %v858
        %v860 = vlaneseq
        %v861 = vshrl.u32 %v860, 7
        %v862 = vsub.s32 %v859, %v861
        %v863 = vrot.slane %v849, %v862
        %v864 = vcombine.high %v840, 0
        %v865 = vcombine.high %v847, 0
        %v866 = vcombine.high %v856, 0
        %v867 = vcombine.high %v863, 0
        %v868 = vcombine.high %v792, %v333
        %v870 = vunpack.c.l.s4 1983009808
        %v871 = vunpack.c.0.s8 %v870
        %v872 = vlaneseq
        %v873 = vshrl.u32 %v872, 7
        %v874 = vsub.s32 %v871, %v873
        %v875 = vrot.slane %v792, %v874
        %v877 = vunpack.c.l.s4 1983009808
        %v878 = vunpack.c.0.s8 %v877
        %v879 = vlaneseq
        %v880 = vshrl.u32 %v879, 7
        %v881 = vsub.s32 %v878, %v880
        %v882 = vrot.slane %v868, %v881
        %v883 = vcombine.high %v800, %v333
        %v885 = vunpack.c.l.s4 1983009808
        %v886 = vunpack.c.0.s8 %v885
        %v887 = vlaneseq
        %v888 = vshrl.u32 %v887, 7
        %v889 = vsub.s32 %v886, %v888
        %v890 = vrot.slane %v800, %v889
        %v892 = vunpack.c.l.s4 1983009808
        %v893 = vunpack.c.0.s8 %v892
        %v894 = vlaneseq
        %v895 = vshrl.u32 %v894, 7
        %v896 = vsub.s32 %v893, %v895
        %v897 = vrot.slane %v883, %v896
        %v898 = vcombine.low %v875, %v890
        %v899 = vcombine.high %v875, %v890
        %v901 = vunpack.c.l.s4 1934713408
        %v902 = vunpack.c.0.s8 %v901
        %v903 = vlaneseq
        %v904 = vshrl.u32 %v903, 7
        %v905 = vsub.s32 %v902, %v904
        %v906 = vrot.slane %v898, %v905
        %v908 = vunpack.c.l.s4 1934713408
        %v909 = vunpack.c.0.s8 %v908
        %v910 = vlaneseq
        %v911 = vshrl.u32 %v910, 7
        %v912 = vsub.s32 %v909, %v911
        %v913 = vrot.slane %v899, %v912
        %v914 = vcombine.low %v882, %v897
        %v915 = vcombine.high %v882, %v897
        %v917 = vunpack.c.l.s4 1934713408
        %v918 = vunpack.c.0.s8 %v917
        %v919 = vlaneseq
        %v920 = vshrl.u32 %v919, 7
        %v921 = vsub.s32 %v918, %v920
        %v922 = vrot.slane %v914, %v921
        %v924 = vunpack.c.l.s4 1934713408
        %v925 = vunpack.c.0.s8 %v924
        %v926 = vlaneseq
        %v927 = vshrl.u32 %v926, 7
        %v928 = vsub.s32 %v925, %v927
        %v929 = vrot.slane %v915, %v928
        %v930 = vcombine.high %v906, 0
        %v931 = vcombine.high %v913, 0
        %v932 = vcombine.high %v922, 0
        %v933 = vcombine.high %v929, 0
        %935 = vrot.lane.b32.xlu0 %v906, 16
        %v936 = vpop.permute.xlu0 %935
        %938 = vrot.lane.b32.xlu0 %v864, 32
        %v939 = vpop.permute.xlu0 %938
        %941 = vrot.lane.b32.xlu0 %v930, 48
        %v942 = vpop.permute.xlu0 %941
        %944 = vrot.lane.b32.xlu0 %v847, 64
        %v945 = vpop.permute.xlu0 %944
        %947 = vrot.lane.b32.xlu0 %v913, 80
        %v948 = vpop.permute.xlu0 %947
        %950 = vrot.lane.b32.xlu0 %v865, 96
        %v951 = vpop.permute.xlu0 %950
        %953 = vrot.lane.b32.xlu0 %v931, 112
        %v954 = vpop.permute.xlu0 %953
        %956 = vrot.lane.b32.xlu0 %v922, 16
        %v957 = vpop.permute.xlu0 %956
        %959 = vrot.lane.b32.xlu0 %v866, 32
        %v960 = vpop.permute.xlu0 %959
        %962 = vrot.lane.b32.xlu0 %v932, 48
        %v963 = vpop.permute.xlu0 %962
        %965 = vrot.lane.b32.xlu0 %v863, 64
        %v966 = vpop.permute.xlu0 %965
        %968 = vrot.lane.b32.xlu0 %v929, 80
        %v969 = vpop.permute.xlu0 %968
        %971 = vrot.lane.b32.xlu0 %v867, 96
        %v972 = vpop.permute.xlu0 %971
        %974 = vrot.lane.b32.xlu0 %v933, 112
        %v975 = vpop.permute.xlu0 %974
        %v978 = vsel %vm509, %v840, %v936
        %v980 = vsel %vm513, %v978, %v939
        %v982 = vsel %vm516, %v980, %v942
        %v984 = vsel %vm519, %v982, %v945
        %v986 = vsel %vm522, %v984, %v948
        %v988 = vsel %vm525, %v986, %v951
        %v990 = vsel %vm528, %v988, %v954
        %v993 = vsel %vm509, %v856, %v957
        %v995 = vsel %vm513, %v993, %v960
        %v997 = vsel %vm516, %v995, %v963
        %v999 = vsel %vm519, %v997, %v966
        %v1001 = vsel %vm522, %v999, %v969
        %v1003 = vsel %vm525, %v1001, %v972
        %v1005 = vsel %vm528, %v1003, %v975
        %vm1006 = vsmask.f32 7424
        %v1008 = vshll.u32 %v305, 16
        %v1010 = vrot.slane %v1008, 1
        %v1011 = vor.u32 %v317, %v1010
        %v1013 = vshll.u32 %v306, 16
        %v1015 = vrot.slane %v1013, 1
        %v1016 = vsel %vm1006, %v1011, %v1015
        %v1018 = vshll.u32 %v307, 16
        %v1020 = vrot.slane %v1018, 1
        %v1021 = vor.u32 %v318, %v1020
        %v1023 = vshll.u32 %v308, 16
        %v1025 = vrot.slane %v1023, 1
        %v1026 = vsel %vm1006, %v1021, %v1025
        %v1028 = vshll.u32 %v309, 16
        %v1030 = vrot.slane %v1028, 1
        %v1031 = vor.u32 %v325, %v1030
        %v1033 = vshll.u32 %v310, 16
        %v1035 = vrot.slane %v1033, 1
        %v1036 = vsel %vm1006, %v1031, %v1035
        %v1038 = vshll.u32 %v311, 16
        %v1040 = vrot.slane %v1038, 1
        %v1041 = vor.u32 %v326, %v1040
        %v1043 = vshll.u32 %v312, 16
        %v1045 = vrot.slane %v1043, 1
        %v1046 = vsel %vm1006, %v1041, %v1045
        %v1049 = vpack.i.b16 %v1026, %v1016
        %v1051 = vshrl.u32 %v1016, 16
        %v1052 = vshrl.u32 %v1026, 16
        %v1053 = vpack.i.b16 %v1052, %v1051
        %v1057 = vpack.i.b16 %v1046, %v1036
        %v1059 = vshrl.u32 %v1036, 16
        %v1060 = vshrl.u32 %v1046, 16
        %v1061 = vpack.i.b16 %v1060, %v1059
        %v1063 = vcombine.high %v1049, %v330
        %v1065 = vunpack.c.l.s4 1983009808
        %v1066 = vunpack.c.0.s8 %v1065
        %v1067 = vlaneseq
        %v1068 = vshrl.u32 %v1067, 7
        %v1069 = vsub.s32 %v1066, %v1068
        %v1070 = vrot.slane %v1049, %v1069
        %v1072 = vunpack.c.l.s4 1983009808
        %v1073 = vunpack.c.0.s8 %v1072
        %v1074 = vlaneseq
        %v1075 = vshrl.u32 %v1074, 7
        %v1076 = vsub.s32 %v1073, %v1075
        %v1077 = vrot.slane %v1063, %v1076
        %v1078 = vcombine.high %v1057, %v330
        %v1080 = vunpack.c.l.s4 1983009808
        %v1081 = vunpack.c.0.s8 %v1080
        %v1082 = vlaneseq
        %v1083 = vshrl.u32 %v1082, 7
        %v1084 = vsub.s32 %v1081, %v1083
        %v1085 = vrot.slane %v1057, %v1084
        %v1087 = vunpack.c.l.s4 1983009808
        %v1088 = vunpack.c.0.s8 %v1087
        %v1089 = vlaneseq
        %v1090 = vshrl.u32 %v1089, 7
        %v1091 = vsub.s32 %v1088, %v1090
        %v1092 = vrot.slane %v1078, %v1091
        %v1093 = vcombine.low %v1070, %v1085
        %v1094 = vcombine.high %v1070, %v1085
        %v1096 = vunpack.c.l.s4 1934713408
        %v1097 = vunpack.c.0.s8 %v1096
        %v1098 = vlaneseq
        %v1099 = vshrl.u32 %v1098, 7
        %v1100 = vsub.s32 %v1097, %v1099
        %v1101 = vrot.slane %v1093, %v1100
        %v1103 = vunpack.c.l.s4 1934713408
        %v1104 = vunpack.c.0.s8 %v1103
        %v1105 = vlaneseq
        %v1106 = vshrl.u32 %v1105, 7
        %v1107 = vsub.s32 %v1104, %v1106
        %v1108 = vrot.slane %v1094, %v1107
        %v1109 = vcombine.low %v1077, %v1092
        %v1110 = vcombine.high %v1077, %v1092
        %v1112 = vunpack.c.l.s4 1934713408
        %v1113 = vunpack.c.0.s8 %v1112
        %v1114 = vlaneseq
        %v1115 = vshrl.u32 %v1114, 7
        %v1116 = vsub.s32 %v1113, %v1115
        %v1117 = vrot.slane %v1109, %v1116
        %v1119 = vunpack.c.l.s4 1934713408
        %v1120 = vunpack.c.0.s8 %v1119
        %v1121 = vlaneseq
        %v1122 = vshrl.u32 %v1121, 7
        %v1123 = vsub.s32 %v1120, %v1122
        %v1124 = vrot.slane %v1110, %v1123
        %v1125 = vcombine.high %v1101, 0
        %v1126 = vcombine.high %v1108, 0
        %v1127 = vcombine.high %v1117, 0
        %v1128 = vcombine.high %v1124, 0
        %v1129 = vcombine.high %v1053, %v333
        %v1131 = vunpack.c.l.s4 1983009808
        %v1132 = vunpack.c.0.s8 %v1131
        %v1133 = vlaneseq
        %v1134 = vshrl.u32 %v1133, 7
        %v1135 = vsub.s32 %v1132, %v1134
        %v1136 = vrot.slane %v1053, %v1135
        %v1138 = vunpack.c.l.s4 1983009808
        %v1139 = vunpack.c.0.s8 %v1138
        %v1140 = vlaneseq
        %v1141 = vshrl.u32 %v1140, 7
        %v1142 = vsub.s32 %v1139, %v1141
        %v1143 = vrot.slane %v1129, %v1142
        %v1144 = vcombine.high %v1061, %v333
        %v1146 = vunpack.c.l.s4 1983009808
        %v1147 = vunpack.c.0.s8 %v1146
        %v1148 = vlaneseq
        %v1149 = vshrl.u32 %v1148, 7
        %v1150 = vsub.s32 %v1147, %v1149
        %v1151 = vrot.slane %v1061, %v1150
        %v1153 = vunpack.c.l.s4 1983009808
        %v1154 = vunpack.c.0.s8 %v1153
        %v1155 = vlaneseq
        %v1156 = vshrl.u32 %v1155, 7
        %v1157 = vsub.s32 %v1154, %v1156
        %v1158 = vrot.slane %v1144, %v1157
        %v1159 = vcombine.low %v1136, %v1151
        %v1160 = vcombine.high %v1136, %v1151
        %v1162 = vunpack.c.l.s4 1934713408
        %v1163 = vunpack.c.0.s8 %v1162
        %v1164 = vlaneseq
        %v1165 = vshrl.u32 %v1164, 7
        %v1166 = vsub.s32 %v1163, %v1165
        %v1167 = vrot.slane %v1159, %v1166
        %v1169 = vunpack.c.l.s4 1934713408
        %v1170 = vunpack.c.0.s8 %v1169
        %v1171 = vlaneseq
        %v1172 = vshrl.u32 %v1171, 7
        %v1173 = vsub.s32 %v1170, %v1172
        %v1174 = vrot.slane %v1160, %v1173
        %v1175 = vcombine.low %v1143, %v1158
        %v1176 = vcombine.high %v1143, %v1158
        %v1178 = vunpack.c.l.s4 1934713408
        %v1179 = vunpack.c.0.s8 %v1178
        %v1180 = vlaneseq
        %v1181 = vshrl.u32 %v1180, 7
        %v1182 = vsub.s32 %v1179, %v1181
        %v1183 = vrot.slane %v1175, %v1182
        %v1185 = vunpack.c.l.s4 1934713408
        %v1186 = vunpack.c.0.s8 %v1185
        %v1187 = vlaneseq
        %v1188 = vshrl.u32 %v1187, 7
        %v1189 = vsub.s32 %v1186, %v1188
        %v1190 = vrot.slane %v1176, %v1189
        %v1191 = vcombine.high %v1167, 0
        %v1192 = vcombine.high %v1174, 0
        %v1193 = vcombine.high %v1183, 0
        %v1194 = vcombine.high %v1190, 0
        %1196 = vrot.lane.b32.xlu0 %v1167, 16
        %v1197 = vpop.permute.xlu0 %1196
        %1199 = vrot.lane.b32.xlu0 %v1125, 32
        %v1200 = vpop.permute.xlu0 %1199
        %1202 = vrot.lane.b32.xlu0 %v1191, 48
        %v1203 = vpop.permute.xlu0 %1202
        %1205 = vrot.lane.b32.xlu0 %v1108, 64
        %v1206 = vpop.permute.xlu0 %1205
        %1208 = vrot.lane.b32.xlu0 %v1174, 80
        %v1209 = vpop.permute.xlu0 %1208
        %1211 = vrot.lane.b32.xlu0 %v1126, 96
        %v1212 = vpop.permute.xlu0 %1211
        %1214 = vrot.lane.b32.xlu0 %v1192, 112
        %v1215 = vpop.permute.xlu0 %1214
        %1217 = vrot.lane.b32.xlu0 %v1183, 16
        %v1218 = vpop.permute.xlu0 %1217
        %1220 = vrot.lane.b32.xlu0 %v1127, 32
        %v1221 = vpop.permute.xlu0 %1220
        %1223 = vrot.lane.b32.xlu0 %v1193, 48
        %v1224 = vpop.permute.xlu0 %1223
        %1226 = vrot.lane.b32.xlu0 %v1124, 64
        %v1227 = vpop.permute.xlu0 %1226
        %1229 = vrot.lane.b32.xlu0 %v1190, 80
        %v1230 = vpop.permute.xlu0 %1229
        %1232 = vrot.lane.b32.xlu0 %v1128, 96
        %v1233 = vpop.permute.xlu0 %1232
        %1235 = vrot.lane.b32.xlu0 %v1194, 112
        %v1236 = vpop.permute.xlu0 %1235
        %v1239 = vsel %vm509, %v1101, %v1197
        %v1241 = vsel %vm513, %v1239, %v1200
        %v1243 = vsel %vm516, %v1241, %v1203
        %v1245 = vsel %vm519, %v1243, %v1206
        %v1247 = vsel %vm522, %v1245, %v1209
        %v1249 = vsel %vm525, %v1247, %v1212
        %v1251 = vsel %vm528, %v1249, %v1215
        %v1254 = vsel %vm509, %v1117, %v1218
        %v1256 = vsel %vm513, %v1254, %v1221
        %v1258 = vsel %vm516, %v1256, %v1224
        %v1260 = vsel %vm519, %v1258, %v1227
        %v1262 = vsel %vm522, %v1260, %v1230
        %v1264 = vsel %vm525, %v1262, %v1233
        %v1266 = vsel %vm528, %v1264, %v1236
        %1267 = vrot.lane.b32.xlu0 %v1016, 127
        %v1268 = vpop.permute.xlu0 %1267
        %1269 = vrot.lane.b32.xlu0 %v1026, 127
        %v1270 = vpop.permute.xlu0 %1269
        %1271 = vrot.lane.b32.xlu0 %v1036, 127
        %v1272 = vpop.permute.xlu0 %1271
        %1273 = vrot.lane.b32.xlu0 %v1046, 127
        %v1274 = vpop.permute.xlu0 %1273
        %v1277 = vpack.i.b16 %v1270, %v1268
        %v1279 = vshrl.u32 %v1268, 16
        %v1280 = vshrl.u32 %v1270, 16
        %v1281 = vpack.i.b16 %v1280, %v1279
        %v1285 = vpack.i.b16 %v1274, %v1272
        %v1287 = vshrl.u32 %v1272, 16
        %v1288 = vshrl.u32 %v1274, 16
        %v1289 = vpack.i.b16 %v1288, %v1287
        %v1291 = vcombine.high %v1277, %v330
        %v1293 = vunpack.c.l.s4 1983009808
        %v1294 = vunpack.c.0.s8 %v1293
        %v1295 = vlaneseq
        %v1296 = vshrl.u32 %v1295, 7
        %v1297 = vsub.s32 %v1294, %v1296
        %v1298 = vrot.slane %v1277, %v1297
        %v1300 = vunpack.c.l.s4 1983009808
        %v1301 = vunpack.c.0.s8 %v1300
        %v1302 = vlaneseq
        %v1303 = vshrl.u32 %v1302, 7
        %v1304 = vsub.s32 %v1301, %v1303
        %v1305 = vrot.slane %v1291, %v1304
        %v1306 = vcombine.high %v1285, %v330
        %v1308 = vunpack.c.l.s4 1983009808
        %v1309 = vunpack.c.0.s8 %v1308
        %v1310 = vlaneseq
        %v1311 = vshrl.u32 %v1310, 7
        %v1312 = vsub.s32 %v1309, %v1311
        %v1313 = vrot.slane %v1285, %v1312
        %v1315 = vunpack.c.l.s4 1983009808
        %v1316 = vunpack.c.0.s8 %v1315
        %v1317 = vlaneseq
        %v1318 = vshrl.u32 %v1317, 7
        %v1319 = vsub.s32 %v1316, %v1318
        %v1320 = vrot.slane %v1306, %v1319
        %v1321 = vcombine.low %v1298, %v1313
        %v1322 = vcombine.high %v1298, %v1313
        %v1324 = vunpack.c.l.s4 1934713408
        %v1325 = vunpack.c.0.s8 %v1324
        %v1326 = vlaneseq
        %v1327 = vshrl.u32 %v1326, 7
        %v1328 = vsub.s32 %v1325, %v1327
        %v1329 = vrot.slane %v1321, %v1328
        %v1331 = vunpack.c.l.s4 1934713408
        %v1332 = vunpack.c.0.s8 %v1331
        %v1333 = vlaneseq
        %v1334 = vshrl.u32 %v1333, 7
        %v1335 = vsub.s32 %v1332, %v1334
        %v1336 = vrot.slane %v1322, %v1335
        %v1337 = vcombine.low %v1305, %v1320
        %v1338 = vcombine.high %v1305, %v1320
        %v1340 = vunpack.c.l.s4 1934713408
        %v1341 = vunpack.c.0.s8 %v1340
        %v1342 = vlaneseq
        %v1343 = vshrl.u32 %v1342, 7
        %v1344 = vsub.s32 %v1341, %v1343
        %v1345 = vrot.slane %v1337, %v1344
        %v1347 = vunpack.c.l.s4 1934713408
        %v1348 = vunpack.c.0.s8 %v1347
        %v1349 = vlaneseq
        %v1350 = vshrl.u32 %v1349, 7
        %v1351 = vsub.s32 %v1348, %v1350
        %v1352 = vrot.slane %v1338, %v1351
        %v1353 = vcombine.high %v1329, 0
        %v1354 = vcombine.high %v1336, 0
        %v1355 = vcombine.high %v1345, 0
        %v1356 = vcombine.high %v1352, 0
        %v1357 = vcombine.high %v1281, %v333
        %v1359 = vunpack.c.l.s4 1983009808
        %v1360 = vunpack.c.0.s8 %v1359
        %v1361 = vlaneseq
        %v1362 = vshrl.u32 %v1361, 7
        %v1363 = vsub.s32 %v1360, %v1362
        %v1364 = vrot.slane %v1281, %v1363
        %v1366 = vunpack.c.l.s4 1983009808
        %v1367 = vunpack.c.0.s8 %v1366
        %v1368 = vlaneseq
        %v1369 = vshrl.u32 %v1368, 7
        %v1370 = vsub.s32 %v1367, %v1369
        %v1371 = vrot.slane %v1357, %v1370
        %v1372 = vcombine.high %v1289, %v333
        %v1374 = vunpack.c.l.s4 1983009808
        %v1375 = vunpack.c.0.s8 %v1374
        %v1376 = vlaneseq
        %v1377 = vshrl.u32 %v1376, 7
        %v1378 = vsub.s32 %v1375, %v1377
        %v1379 = vrot.slane %v1289, %v1378
        %v1381 = vunpack.c.l.s4 1983009808
        %v1382 = vunpack.c.0.s8 %v1381
        %v1383 = vlaneseq
        %v1384 = vshrl.u32 %v1383, 7
        %v1385 = vsub.s32 %v1382, %v1384
        %v1386 = vrot.slane %v1372, %v1385
        %v1387 = vcombine.low %v1364, %v1379
        %v1388 = vcombine.high %v1364, %v1379
        %v1390 = vunpack.c.l.s4 1934713408
        %v1391 = vunpack.c.0.s8 %v1390
        %v1392 = vlaneseq
        %v1393 = vshrl.u32 %v1392, 7
        %v1394 = vsub.s32 %v1391, %v1393
        %v1395 = vrot.slane %v1387, %v1394
        %v1397 = vunpack.c.l.s4 1934713408
        %v1398 = vunpack.c.0.s8 %v1397
        %v1399 = vlaneseq
        %v1400 = vshrl.u32 %v1399, 7
        %v1401 = vsub.s32 %v1398, %v1400
        %v1402 = vrot.slane %v1388, %v1401
        %v1403 = vcombine.low %v1371, %v1386
        %v1404 = vcombine.high %v1371, %v1386
        %v1406 = vunpack.c.l.s4 1934713408
        %v1407 = vunpack.c.0.s8 %v1406
        %v1408 = vlaneseq
        %v1409 = vshrl.u32 %v1408, 7
        %v1410 = vsub.s32 %v1407, %v1409
        %v1411 = vrot.slane %v1403, %v1410
        %v1413 = vunpack.c.l.s4 1934713408
        %v1414 = vunpack.c.0.s8 %v1413
        %v1415 = vlaneseq
        %v1416 = vshrl.u32 %v1415, 7
        %v1417 = vsub.s32 %v1414, %v1416
        %v1418 = vrot.slane %v1404, %v1417
        %v1419 = vcombine.high %v1395, 0
        %v1420 = vcombine.high %v1402, 0
        %v1421 = vcombine.high %v1411, 0
        %v1422 = vcombine.high %v1418, 0
        %1424 = vrot.lane.b32.xlu0 %v1395, 16
        %v1425 = vpop.permute.xlu0 %1424
        %1427 = vrot.lane.b32.xlu0 %v1353, 32
        %v1428 = vpop.permute.xlu0 %1427
        %1430 = vrot.lane.b32.xlu0 %v1419, 48
        %v1431 = vpop.permute.xlu0 %1430
        %1433 = vrot.lane.b32.xlu0 %v1336, 64
        %v1434 = vpop.permute.xlu0 %1433
        %1436 = vrot.lane.b32.xlu0 %v1402, 80
        %v1437 = vpop.permute.xlu0 %1436
        %1439 = vrot.lane.b32.xlu0 %v1354, 96
        %v1440 = vpop.permute.xlu0 %1439
        %1442 = vrot.lane.b32.xlu0 %v1420, 112
        %v1443 = vpop.permute.xlu0 %1442
        %1445 = vrot.lane.b32.xlu0 %v1411, 16
        %v1446 = vpop.permute.xlu0 %1445
        %1448 = vrot.lane.b32.xlu0 %v1355, 32
        %v1449 = vpop.permute.xlu0 %1448
        %1451 = vrot.lane.b32.xlu0 %v1421, 48
        %v1452 = vpop.permute.xlu0 %1451
        %1454 = vrot.lane.b32.xlu0 %v1352, 64
        %v1455 = vpop.permute.xlu0 %1454
        %1457 = vrot.lane.b32.xlu0 %v1418, 80
        %v1458 = vpop.permute.xlu0 %1457
        %1460 = vrot.lane.b32.xlu0 %v1356, 96
        %v1461 = vpop.permute.xlu0 %1460
        %1463 = vrot.lane.b32.xlu0 %v1422, 112
        %v1464 = vpop.permute.xlu0 %1463
        %v1467 = vsel %vm509, %v1329, %v1425
        %v1469 = vsel %vm513, %v1467, %v1428
        %v1471 = vsel %vm516, %v1469, %v1431
        %v1473 = vsel %vm519, %v1471, %v1434
        %v1475 = vsel %vm522, %v1473, %v1437
        %v1477 = vsel %vm525, %v1475, %v1440
        %v1479 = vsel %vm528, %v1477, %v1443
        %v1482 = vsel %vm509, %v1345, %v1446
        %v1484 = vsel %vm513, %v1482, %v1449
        %v1486 = vsel %vm516, %v1484, %v1452
        %v1488 = vsel %vm519, %v1486, %v1455
        %v1490 = vsel %vm522, %v1488, %v1458
        %v1492 = vsel %vm525, %v1490, %v1461
        %v1494 = vsel %vm528, %v1492, %v1464
        %1495 = vrot.lane.b32.xlu0 %v1016, 126
        %v1496 = vpop.permute.xlu0 %1495
        %1497 = vrot.lane.b32.xlu0 %v1026, 126
        %v1498 = vpop.permute.xlu0 %1497
        %1499 = vrot.lane.b32.xlu0 %v1036, 126
        %v1500 = vpop.permute.xlu0 %1499
        %1501 = vrot.lane.b32.xlu0 %v1046, 126
        %v1502 = vpop.permute.xlu0 %1501
        %v1505 = vpack.i.b16 %v1498, %v1496
        %v1507 = vshrl.u32 %v1496, 16
        %v1508 = vshrl.u32 %v1498, 16
        %v1509 = vpack.i.b16 %v1508, %v1507
        %v1513 = vpack.i.b16 %v1502, %v1500
        %v1515 = vshrl.u32 %v1500, 16
        %v1516 = vshrl.u32 %v1502, 16
        %v1517 = vpack.i.b16 %v1516, %v1515
        %v1519 = vcombine.high %v1505, %v330
        %v1521 = vunpack.c.l.s4 1983009808
        %v1522 = vunpack.c.0.s8 %v1521
        %v1523 = vlaneseq
        %v1524 = vshrl.u32 %v1523, 7
        %v1525 = vsub.s32 %v1522, %v1524
        %v1526 = vrot.slane %v1505, %v1525
        %v1528 = vunpack.c.l.s4 1983009808
        %v1529 = vunpack.c.0.s8 %v1528
        %v1530 = vlaneseq
        %v1531 = vshrl.u32 %v1530, 7
        %v1532 = vsub.s32 %v1529, %v1531
        %v1533 = vrot.slane %v1519, %v1532
        %v1534 = vcombine.high %v1513, %v330
        %v1536 = vunpack.c.l.s4 1983009808
        %v1537 = vunpack.c.0.s8 %v1536
        %v1538 = vlaneseq
        %v1539 = vshrl.u32 %v1538, 7
        %v1540 = vsub.s32 %v1537, %v1539
        %v1541 = vrot.slane %v1513, %v1540
        %v1543 = vunpack.c.l.s4 1983009808
        %v1544 = vunpack.c.0.s8 %v1543
        %v1545 = vlaneseq
        %v1546 = vshrl.u32 %v1545, 7
        %v1547 = vsub.s32 %v1544, %v1546
        %v1548 = vrot.slane %v1534, %v1547
        %v1549 = vcombine.low %v1526, %v1541
        %v1550 = vcombine.high %v1526, %v1541
        %v1552 = vunpack.c.l.s4 1934713408
        %v1553 = vunpack.c.0.s8 %v1552
        %v1554 = vlaneseq
        %v1555 = vshrl.u32 %v1554, 7
        %v1556 = vsub.s32 %v1553, %v1555
        %v1557 = vrot.slane %v1549, %v1556
        %v1559 = vunpack.c.l.s4 1934713408
        %v1560 = vunpack.c.0.s8 %v1559
        %v1561 = vlaneseq
        %v1562 = vshrl.u32 %v1561, 7
        %v1563 = vsub.s32 %v1560, %v1562
        %v1564 = vrot.slane %v1550, %v1563
        %v1565 = vcombine.low %v1533, %v1548
        %v1566 = vcombine.high %v1533, %v1548
        %v1568 = vunpack.c.l.s4 1934713408
        %v1569 = vunpack.c.0.s8 %v1568
        %v1570 = vlaneseq
        %v1571 = vshrl.u32 %v1570, 7
        %v1572 = vsub.s32 %v1569, %v1571
        %v1573 = vrot.slane %v1565, %v1572
        %v1575 = vunpack.c.l.s4 1934713408
        %v1576 = vunpack.c.0.s8 %v1575
        %v1577 = vlaneseq
        %v1578 = vshrl.u32 %v1577, 7
        %v1579 = vsub.s32 %v1576, %v1578
        %v1580 = vrot.slane %v1566, %v1579
        %v1581 = vcombine.high %v1557, 0
        %v1582 = vcombine.high %v1564, 0
        %v1583 = vcombine.high %v1573, 0
        %v1584 = vcombine.high %v1580, 0
        %v1585 = vcombine.high %v1509, %v333
        %v1587 = vunpack.c.l.s4 1983009808
        %v1588 = vunpack.c.0.s8 %v1587
        %v1589 = vlaneseq
        %v1590 = vshrl.u32 %v1589, 7
        %v1591 = vsub.s32 %v1588, %v1590
        %v1592 = vrot.slane %v1509, %v1591
        %v1594 = vunpack.c.l.s4 1983009808
        %v1595 = vunpack.c.0.s8 %v1594
        %v1596 = vlaneseq
        %v1597 = vshrl.u32 %v1596, 7
        %v1598 = vsub.s32 %v1595, %v1597
        %v1599 = vrot.slane %v1585, %v1598
        %v1600 = vcombine.high %v1517, %v333
        %v1602 = vunpack.c.l.s4 1983009808
        %v1603 = vunpack.c.0.s8 %v1602
        %v1604 = vlaneseq
        %v1605 = vshrl.u32 %v1604, 7
        %v1606 = vsub.s32 %v1603, %v1605
        %v1607 = vrot.slane %v1517, %v1606
        %v1609 = vunpack.c.l.s4 1983009808
        %v1610 = vunpack.c.0.s8 %v1609
        %v1611 = vlaneseq
        %v1612 = vshrl.u32 %v1611, 7
        %v1613 = vsub.s32 %v1610, %v1612
        %v1614 = vrot.slane %v1600, %v1613
        %v1615 = vcombine.low %v1592, %v1607
        %v1616 = vcombine.high %v1592, %v1607
        %v1618 = vunpack.c.l.s4 1934713408
        %v1619 = vunpack.c.0.s8 %v1618
        %v1620 = vlaneseq
        %v1621 = vshrl.u32 %v1620, 7
        %v1622 = vsub.s32 %v1619, %v1621
        %v1623 = vrot.slane %v1615, %v1622
        %v1625 = vunpack.c.l.s4 1934713408
        %v1626 = vunpack.c.0.s8 %v1625
        %v1627 = vlaneseq
        %v1628 = vshrl.u32 %v1627, 7
        %v1629 = vsub.s32 %v1626, %v1628
        %v1630 = vrot.slane %v1616, %v1629
        %v1631 = vcombine.low %v1599, %v1614
        %v1632 = vcombine.high %v1599, %v1614
        %v1634 = vunpack.c.l.s4 1934713408
        %v1635 = vunpack.c.0.s8 %v1634
        %v1636 = vlaneseq
        %v1637 = vshrl.u32 %v1636, 7
        %v1638 = vsub.s32 %v1635, %v1637
        %v1639 = vrot.slane %v1631, %v1638
        %v1641 = vunpack.c.l.s4 1934713408
        %v1642 = vunpack.c.0.s8 %v1641
        %v1643 = vlaneseq
        %v1644 = vshrl.u32 %v1643, 7
        %v1645 = vsub.s32 %v1642, %v1644
        %v1646 = vrot.slane %v1632, %v1645
        %v1647 = vcombine.high %v1623, 0
        %v1648 = vcombine.high %v1630, 0
        %v1649 = vcombine.high %v1639, 0
        %v1650 = vcombine.high %v1646, 0
        %1652 = vrot.lane.b32.xlu0 %v1623, 16
        %v1653 = vpop.permute.xlu0 %1652
        %1655 = vrot.lane.b32.xlu0 %v1581, 32
        %v1656 = vpop.permute.xlu0 %1655
        %1658 = vrot.lane.b32.xlu0 %v1647, 48
        %v1659 = vpop.permute.xlu0 %1658
        %1661 = vrot.lane.b32.xlu0 %v1564, 64
        %v1662 = vpop.permute.xlu0 %1661
        %1664 = vrot.lane.b32.xlu0 %v1630, 80
        %v1665 = vpop.permute.xlu0 %1664
        %1667 = vrot.lane.b32.xlu0 %v1582, 96
        %v1668 = vpop.permute.xlu0 %1667
        %1670 = vrot.lane.b32.xlu0 %v1648, 112
        %v1671 = vpop.permute.xlu0 %1670
        %1673 = vrot.lane.b32.xlu0 %v1639, 16
        %v1674 = vpop.permute.xlu0 %1673
        %1676 = vrot.lane.b32.xlu0 %v1583, 32
        %v1677 = vpop.permute.xlu0 %1676
        %1679 = vrot.lane.b32.xlu0 %v1649, 48
        %v1680 = vpop.permute.xlu0 %1679
        %1682 = vrot.lane.b32.xlu0 %v1580, 64
        %v1683 = vpop.permute.xlu0 %1682
        %1685 = vrot.lane.b32.xlu0 %v1646, 80
        %v1686 = vpop.permute.xlu0 %1685
        %1688 = vrot.lane.b32.xlu0 %v1584, 96
        %v1689 = vpop.permute.xlu0 %1688
        %1691 = vrot.lane.b32.xlu0 %v1650, 112
        %v1692 = vpop.permute.xlu0 %1691
        %v1695 = vsel %vm509, %v1557, %v1653
        %v1697 = vsel %vm513, %v1695, %v1656
        %v1699 = vsel %vm516, %v1697, %v1659
        %v1701 = vsel %vm519, %v1699, %v1662
        %v1703 = vsel %vm522, %v1701, %v1665
        %v1705 = vsel %vm525, %v1703, %v1668
        %v1707 = vsel %vm528, %v1705, %v1671
        %v1710 = vsel %vm509, %v1573, %v1674
        %v1712 = vsel %vm513, %v1710, %v1677
        %v1714 = vsel %vm516, %v1712, %v1680
        %v1716 = vsel %vm519, %v1714, %v1683
        %v1718 = vsel %vm522, %v1716, %v1686
        %v1720 = vsel %vm525, %v1718, %v1689
        %v1722 = vsel %vm528, %v1720, %v1692
        %vm1727 = vcmask 1046528
        %v1728 = vrot.slane %v305, 1
        %v1729 = vrot.slane %v306, 1
        %v1730 = vsel %vm1727, %v1728, %v1729
        %v1731 = vrot.slane %v307, 1
        %v1732 = vrot.slane %v308, 1
        %v1733 = vsel %vm1727, %v1731, %v1732
        %v1734 = vrot.slane %v309, 1
        %v1735 = vrot.slane %v310, 1
        %v1736 = vsel %vm1727, %v1734, %v1735
        %v1737 = vrot.slane %v311, 1
        %v1738 = vrot.slane %v312, 1
        %v1739 = vsel %vm1727, %v1737, %v1738
        %v1742 = vpack.i.b16 %v1733, %v1730
        %v1744 = vshrl.u32 %v1730, 16
        %v1745 = vshrl.u32 %v1733, 16
        %v1746 = vpack.i.b16 %v1745, %v1744
        %v1750 = vpack.i.b16 %v1739, %v1736
        %v1752 = vshrl.u32 %v1736, 16
        %v1753 = vshrl.u32 %v1739, 16
        %v1754 = vpack.i.b16 %v1753, %v1752
        %v1756 = vcombine.high %v1742, %v330
        %v1758 = vunpack.c.l.s4 1983009808
        %v1759 = vunpack.c.0.s8 %v1758
        %v1760 = vlaneseq
        %v1761 = vshrl.u32 %v1760, 7
        %v1762 = vsub.s32 %v1759, %v1761
        %v1763 = vrot.slane %v1742, %v1762
        %v1765 = vunpack.c.l.s4 1983009808
        %v1766 = vunpack.c.0.s8 %v1765
        %v1767 = vlaneseq
        %v1768 = vshrl.u32 %v1767, 7
        %v1769 = vsub.s32 %v1766, %v1768
        %v1770 = vrot.slane %v1756, %v1769
        %v1771 = vcombine.high %v1750, %v330
        %v1773 = vunpack.c.l.s4 1983009808
        %v1774 = vunpack.c.0.s8 %v1773
        %v1775 = vlaneseq
        %v1776 = vshrl.u32 %v1775, 7
        %v1777 = vsub.s32 %v1774, %v1776
        %v1778 = vrot.slane %v1750, %v1777
        %v1780 = vunpack.c.l.s4 1983009808
        %v1781 = vunpack.c.0.s8 %v1780
        %v1782 = vlaneseq
        %v1783 = vshrl.u32 %v1782, 7
        %v1784 = vsub.s32 %v1781, %v1783
        %v1785 = vrot.slane %v1771, %v1784
        %v1786 = vcombine.low %v1763, %v1778
        %v1787 = vcombine.high %v1763, %v1778
        %v1789 = vunpack.c.l.s4 1934713408
        %v1790 = vunpack.c.0.s8 %v1789
        %v1791 = vlaneseq
        %v1792 = vshrl.u32 %v1791, 7
        %v1793 = vsub.s32 %v1790, %v1792
        %v1794 = vrot.slane %v1786, %v1793
        %v1796 = vunpack.c.l.s4 1934713408
        %v1797 = vunpack.c.0.s8 %v1796
        %v1798 = vlaneseq
        %v1799 = vshrl.u32 %v1798, 7
        %v1800 = vsub.s32 %v1797, %v1799
        %v1801 = vrot.slane %v1787, %v1800
        %v1802 = vcombine.low %v1770, %v1785
        %v1803 = vcombine.high %v1770, %v1785
        %v1805 = vunpack.c.l.s4 1934713408
        %v1806 = vunpack.c.0.s8 %v1805
        %v1807 = vlaneseq
        %v1808 = vshrl.u32 %v1807, 7
        %v1809 = vsub.s32 %v1806, %v1808
        %v1810 = vrot.slane %v1802, %v1809
        %v1812 = vunpack.c.l.s4 1934713408
        %v1813 = vunpack.c.0.s8 %v1812
        %v1814 = vlaneseq
        %v1815 = vshrl.u32 %v1814, 7
        %v1816 = vsub.s32 %v1813, %v1815
        %v1817 = vrot.slane %v1803, %v1816
        %v1818 = vcombine.high %v1794, 0
        %v1819 = vcombine.high %v1801, 0
        %v1820 = vcombine.high %v1810, 0
        %v1821 = vcombine.high %v1817, 0
        %v1822 = vcombine.high %v1746, %v333
        %v1824 = vunpack.c.l.s4 1983009808
        %v1825 = vunpack.c.0.s8 %v1824
        %v1826 = vlaneseq
        %v1827 = vshrl.u32 %v1826, 7
        %v1828 = vsub.s32 %v1825, %v1827
        %v1829 = vrot.slane %v1746, %v1828
        %v1831 = vunpack.c.l.s4 1983009808
        %v1832 = vunpack.c.0.s8 %v1831
        %v1833 = vlaneseq
        %v1834 = vshrl.u32 %v1833, 7
        %v1835 = vsub.s32 %v1832, %v1834
        %v1836 = vrot.slane %v1822, %v1835
        %v1837 = vcombine.high %v1754, %v333
        %v1839 = vunpack.c.l.s4 1983009808
        %v1840 = vunpack.c.0.s8 %v1839
        %v1841 = vlaneseq
        %v1842 = vshrl.u32 %v1841, 7
        %v1843 = vsub.s32 %v1840, %v1842
        %v1844 = vrot.slane %v1754, %v1843
        %v1846 = vunpack.c.l.s4 1983009808
        %v1847 = vunpack.c.0.s8 %v1846
        %v1848 = vlaneseq
        %v1849 = vshrl.u32 %v1848, 7
        %v1850 = vsub.s32 %v1847, %v1849
        %v1851 = vrot.slane %v1837, %v1850
        %v1852 = vcombine.low %v1829, %v1844
        %v1853 = vcombine.high %v1829, %v1844
        %v1855 = vunpack.c.l.s4 1934713408
        %v1856 = vunpack.c.0.s8 %v1855
        %v1857 = vlaneseq
        %v1858 = vshrl.u32 %v1857, 7
        %v1859 = vsub.s32 %v1856, %v1858
        %v1860 = vrot.slane %v1852, %v1859
        %v1862 = vunpack.c.l.s4 1934713408
        %v1863 = vunpack.c.0.s8 %v1862
        %v1864 = vlaneseq
        %v1865 = vshrl.u32 %v1864, 7
        %v1866 = vsub.s32 %v1863, %v1865
        %v1867 = vrot.slane %v1853, %v1866
        %v1868 = vcombine.low %v1836, %v1851
        %v1869 = vcombine.high %v1836, %v1851
        %v1871 = vunpack.c.l.s4 1934713408
        %v1872 = vunpack.c.0.s8 %v1871
        %v1873 = vlaneseq
        %v1874 = vshrl.u32 %v1873, 7
        %v1875 = vsub.s32 %v1872, %v1874
        %v1876 = vrot.slane %v1868, %v1875
        %v1878 = vunpack.c.l.s4 1934713408
        %v1879 = vunpack.c.0.s8 %v1878
        %v1880 = vlaneseq
        %v1881 = vshrl.u32 %v1880, 7
        %v1882 = vsub.s32 %v1879, %v1881
        %v1883 = vrot.slane %v1869, %v1882
        %v1884 = vcombine.high %v1860, 0
        %v1885 = vcombine.high %v1867, 0
        %v1886 = vcombine.high %v1876, 0
        %v1887 = vcombine.high %v1883, 0
        %1889 = vrot.lane.b32.xlu0 %v1860, 16
        %v1890 = vpop.permute.xlu0 %1889
        %1892 = vrot.lane.b32.xlu0 %v1818, 32
        %v1893 = vpop.permute.xlu0 %1892
        %1895 = vrot.lane.b32.xlu0 %v1884, 48
        %v1896 = vpop.permute.xlu0 %1895
        %1898 = vrot.lane.b32.xlu0 %v1801, 64
        %v1899 = vpop.permute.xlu0 %1898
        %1901 = vrot.lane.b32.xlu0 %v1867, 80
        %v1902 = vpop.permute.xlu0 %1901
        %1904 = vrot.lane.b32.xlu0 %v1819, 96
        %v1905 = vpop.permute.xlu0 %1904
        %1907 = vrot.lane.b32.xlu0 %v1885, 112
        %v1908 = vpop.permute.xlu0 %1907
        %1910 = vrot.lane.b32.xlu0 %v1876, 16
        %v1911 = vpop.permute.xlu0 %1910
        %1913 = vrot.lane.b32.xlu0 %v1820, 32
        %v1914 = vpop.permute.xlu0 %1913
        %1916 = vrot.lane.b32.xlu0 %v1886, 48
        %v1917 = vpop.permute.xlu0 %1916
        %1919 = vrot.lane.b32.xlu0 %v1817, 64
        %v1920 = vpop.permute.xlu0 %1919
        %1922 = vrot.lane.b32.xlu0 %v1883, 80
        %v1923 = vpop.permute.xlu0 %1922
        %1925 = vrot.lane.b32.xlu0 %v1821, 96
        %v1926 = vpop.permute.xlu0 %1925
        %1928 = vrot.lane.b32.xlu0 %v1887, 112
        %v1929 = vpop.permute.xlu0 %1928
        %v1932 = vsel %vm509, %v1794, %v1890
        %v1934 = vsel %vm513, %v1932, %v1893
        %v1936 = vsel %vm516, %v1934, %v1896
        %v1938 = vsel %vm519, %v1936, %v1899
        %v1940 = vsel %vm522, %v1938, %v1902
        %v1942 = vsel %vm525, %v1940, %v1905
        %v1944 = vsel %vm528, %v1942, %v1908
        %v1947 = vsel %vm509, %v1810, %v1911
        %v1949 = vsel %vm513, %v1947, %v1914
        %v1951 = vsel %vm516, %v1949, %v1917
        %v1953 = vsel %vm519, %v1951, %v1920
        %v1955 = vsel %vm522, %v1953, %v1923
        %v1957 = vsel %vm525, %v1955, %v1926
        %v1959 = vsel %vm528, %v1957, %v1929
        %1960 = vrot.lane.b32.xlu0 %v1730, 127
        %v1961 = vpop.permute.xlu0 %1960
        %1962 = vrot.lane.b32.xlu0 %v1733, 127
        %v1963 = vpop.permute.xlu0 %1962
        %1964 = vrot.lane.b32.xlu0 %v1736, 127
        %v1965 = vpop.permute.xlu0 %1964
        %1966 = vrot.lane.b32.xlu0 %v1739, 127
        %v1967 = vpop.permute.xlu0 %1966
        %v1970 = vpack.i.b16 %v1963, %v1961
        %v1972 = vshrl.u32 %v1961, 16
        %v1973 = vshrl.u32 %v1963, 16
        %v1974 = vpack.i.b16 %v1973, %v1972
        %v1978 = vpack.i.b16 %v1967, %v1965
        %v1980 = vshrl.u32 %v1965, 16
        %v1981 = vshrl.u32 %v1967, 16
        %v1982 = vpack.i.b16 %v1981, %v1980
        %v1984 = vcombine.high %v1970, %v330
        %v1986 = vunpack.c.l.s4 1983009808
        %v1987 = vunpack.c.0.s8 %v1986
        %v1988 = vlaneseq
        %v1989 = vshrl.u32 %v1988, 7
        %v1990 = vsub.s32 %v1987, %v1989
        %v1991 = vrot.slane %v1970, %v1990
        %v1993 = vunpack.c.l.s4 1983009808
        %v1994 = vunpack.c.0.s8 %v1993
        %v1995 = vlaneseq
        %v1996 = vshrl.u32 %v1995, 7
        %v1997 = vsub.s32 %v1994, %v1996
        %v1998 = vrot.slane %v1984, %v1997
        %v1999 = vcombine.high %v1978, %v330
        %v2001 = vunpack.c.l.s4 1983009808
        %v2002 = vunpack.c.0.s8 %v2001
        %v2003 = vlaneseq
        %v2004 = vshrl.u32 %v2003, 7
        %v2005 = vsub.s32 %v2002, %v2004
        %v2006 = vrot.slane %v1978, %v2005
        %v2008 = vunpack.c.l.s4 1983009808
        %v2009 = vunpack.c.0.s8 %v2008
        %v2010 = vlaneseq
        %v2011 = vshrl.u32 %v2010, 7
        %v2012 = vsub.s32 %v2009, %v2011
        %v2013 = vrot.slane %v1999, %v2012
        %v2014 = vcombine.low %v1991, %v2006
        %v2015 = vcombine.high %v1991, %v2006
        %v2017 = vunpack.c.l.s4 1934713408
        %v2018 = vunpack.c.0.s8 %v2017
        %v2019 = vlaneseq
        %v2020 = vshrl.u32 %v2019, 7
        %v2021 = vsub.s32 %v2018, %v2020
        %v2022 = vrot.slane %v2014, %v2021
        %v2024 = vunpack.c.l.s4 1934713408
        %v2025 = vunpack.c.0.s8 %v2024
        %v2026 = vlaneseq
        %v2027 = vshrl.u32 %v2026, 7
        %v2028 = vsub.s32 %v2025, %v2027
        %v2029 = vrot.slane %v2015, %v2028
        %v2030 = vcombine.low %v1998, %v2013
        %v2031 = vcombine.high %v1998, %v2013
        %v2033 = vunpack.c.l.s4 1934713408
        %v2034 = vunpack.c.0.s8 %v2033
        %v2035 = vlaneseq
        %v2036 = vshrl.u32 %v2035, 7
        %v2037 = vsub.s32 %v2034, %v2036
        %v2038 = vrot.slane %v2030, %v2037
        %v2040 = vunpack.c.l.s4 1934713408
        %v2041 = vunpack.c.0.s8 %v2040
        %v2042 = vlaneseq
        %v2043 = vshrl.u32 %v2042, 7
        %v2044 = vsub.s32 %v2041, %v2043
        %v2045 = vrot.slane %v2031, %v2044
        %v2046 = vcombine.high %v2022, 0
        %v2047 = vcombine.high %v2029, 0
        %v2048 = vcombine.high %v2038, 0
        %v2049 = vcombine.high %v2045, 0
        %v2050 = vcombine.high %v1974, %v333
        %v2052 = vunpack.c.l.s4 1983009808
        %v2053 = vunpack.c.0.s8 %v2052
        %v2054 = vlaneseq
        %v2055 = vshrl.u32 %v2054, 7
        %v2056 = vsub.s32 %v2053, %v2055
        %v2057 = vrot.slane %v1974, %v2056
        %v2059 = vunpack.c.l.s4 1983009808
        %v2060 = vunpack.c.0.s8 %v2059
        %v2061 = vlaneseq
        %v2062 = vshrl.u32 %v2061, 7
        %v2063 = vsub.s32 %v2060, %v2062
        %v2064 = vrot.slane %v2050, %v2063
        %v2065 = vcombine.high %v1982, %v333
        %v2067 = vunpack.c.l.s4 1983009808
        %v2068 = vunpack.c.0.s8 %v2067
        %v2069 = vlaneseq
        %v2070 = vshrl.u32 %v2069, 7
        %v2071 = vsub.s32 %v2068, %v2070
        %v2072 = vrot.slane %v1982, %v2071
        %v2074 = vunpack.c.l.s4 1983009808
        %v2075 = vunpack.c.0.s8 %v2074
        %v2076 = vlaneseq
        %v2077 = vshrl.u32 %v2076, 7
        %v2078 = vsub.s32 %v2075, %v2077
        %v2079 = vrot.slane %v2065, %v2078
        %v2080 = vcombine.low %v2057, %v2072
        %v2081 = vcombine.high %v2057, %v2072
        %v2083 = vunpack.c.l.s4 1934713408
        %v2084 = vunpack.c.0.s8 %v2083
        %v2085 = vlaneseq
        %v2086 = vshrl.u32 %v2085, 7
        %v2087 = vsub.s32 %v2084, %v2086
        %v2088 = vrot.slane %v2080, %v2087
        %v2090 = vunpack.c.l.s4 1934713408
        %v2091 = vunpack.c.0.s8 %v2090
        %v2092 = vlaneseq
        %v2093 = vshrl.u32 %v2092, 7
        %v2094 = vsub.s32 %v2091, %v2093
        %v2095 = vrot.slane %v2081, %v2094
        %v2096 = vcombine.low %v2064, %v2079
        %v2097 = vcombine.high %v2064, %v2079
        %v2099 = vunpack.c.l.s4 1934713408
        %v2100 = vunpack.c.0.s8 %v2099
        %v2101 = vlaneseq
        %v2102 = vshrl.u32 %v2101, 7
        %v2103 = vsub.s32 %v2100, %v2102
        %v2104 = vrot.slane %v2096, %v2103
        %v2106 = vunpack.c.l.s4 1934713408
        %v2107 = vunpack.c.0.s8 %v2106
        %v2108 = vlaneseq
        %v2109 = vshrl.u32 %v2108, 7
        %v2110 = vsub.s32 %v2107, %v2109
        %v2111 = vrot.slane %v2097, %v2110
        %v2112 = vcombine.high %v2088, 0
        %v2113 = vcombine.high %v2095, 0
        %v2114 = vcombine.high %v2104, 0
        %v2115 = vcombine.high %v2111, 0
        %2117 = vrot.lane.b32.xlu0 %v2088, 16
        %v2118 = vpop.permute.xlu0 %2117
        %2120 = vrot.lane.b32.xlu0 %v2046, 32
        %v2121 = vpop.permute.xlu0 %2120
        %2123 = vrot.lane.b32.xlu0 %v2112, 48
        %v2124 = vpop.permute.xlu0 %2123
        %2126 = vrot.lane.b32.xlu0 %v2029, 64
        %v2127 = vpop.permute.xlu0 %2126
        %2129 = vrot.lane.b32.xlu0 %v2095, 80
        %v2130 = vpop.permute.xlu0 %2129
        %2132 = vrot.lane.b32.xlu0 %v2047, 96
        %v2133 = vpop.permute.xlu0 %2132
        %2135 = vrot.lane.b32.xlu0 %v2113, 112
        %v2136 = vpop.permute.xlu0 %2135
        %2138 = vrot.lane.b32.xlu0 %v2104, 16
        %v2139 = vpop.permute.xlu0 %2138
        %2141 = vrot.lane.b32.xlu0 %v2048, 32
        %v2142 = vpop.permute.xlu0 %2141
        %2144 = vrot.lane.b32.xlu0 %v2114, 48
        %v2145 = vpop.permute.xlu0 %2144
        %2147 = vrot.lane.b32.xlu0 %v2045, 64
        %v2148 = vpop.permute.xlu0 %2147
        %2150 = vrot.lane.b32.xlu0 %v2111, 80
        %v2151 = vpop.permute.xlu0 %2150
        %2153 = vrot.lane.b32.xlu0 %v2049, 96
        %v2154 = vpop.permute.xlu0 %2153
        %2156 = vrot.lane.b32.xlu0 %v2115, 112
        %v2157 = vpop.permute.xlu0 %2156
        %v2160 = vsel %vm509, %v2022, %v2118
        %v2162 = vsel %vm513, %v2160, %v2121
        %v2164 = vsel %vm516, %v2162, %v2124
        %v2166 = vsel %vm519, %v2164, %v2127
        %v2168 = vsel %vm522, %v2166, %v2130
        %v2170 = vsel %vm525, %v2168, %v2133
        %v2172 = vsel %vm528, %v2170, %v2136
        %v2175 = vsel %vm509, %v2038, %v2139
        %v2177 = vsel %vm513, %v2175, %v2142
        %v2179 = vsel %vm516, %v2177, %v2145
        %v2181 = vsel %vm519, %v2179, %v2148
        %v2183 = vsel %vm522, %v2181, %v2151
        %v2185 = vsel %vm525, %v2183, %v2154
        %v2187 = vsel %vm528, %v2185, %v2157
        %2188 = vrot.lane.b32.xlu0 %v1730, 126
        %v2189 = vpop.permute.xlu0 %2188
        %2190 = vrot.lane.b32.xlu0 %v1733, 126
        %v2191 = vpop.permute.xlu0 %2190
        %2192 = vrot.lane.b32.xlu0 %v1736, 126
        %v2193 = vpop.permute.xlu0 %2192
        %2194 = vrot.lane.b32.xlu0 %v1739, 126
        %v2195 = vpop.permute.xlu0 %2194
        %v2198 = vpack.i.b16 %v2191, %v2189
        %v2200 = vshrl.u32 %v2189, 16
        %v2201 = vshrl.u32 %v2191, 16
        %v2202 = vpack.i.b16 %v2201, %v2200
        %v2206 = vpack.i.b16 %v2195, %v2193
        %v2208 = vshrl.u32 %v2193, 16
        %v2209 = vshrl.u32 %v2195, 16
        %v2210 = vpack.i.b16 %v2209, %v2208
        %v2212 = vcombine.high %v2198, %v330
        %v2214 = vunpack.c.l.s4 1983009808
        %v2215 = vunpack.c.0.s8 %v2214
        %v2216 = vlaneseq
        %v2217 = vshrl.u32 %v2216, 7
        %v2218 = vsub.s32 %v2215, %v2217
        %v2219 = vrot.slane %v2198, %v2218
        %v2221 = vunpack.c.l.s4 1983009808
        %v2222 = vunpack.c.0.s8 %v2221
        %v2223 = vlaneseq
        %v2224 = vshrl.u32 %v2223, 7
        %v2225 = vsub.s32 %v2222, %v2224
        %v2226 = vrot.slane %v2212, %v2225
        %v2227 = vcombine.high %v2206, %v330
        %v2229 = vunpack.c.l.s4 1983009808
        %v2230 = vunpack.c.0.s8 %v2229
        %v2231 = vlaneseq
        %v2232 = vshrl.u32 %v2231, 7
        %v2233 = vsub.s32 %v2230, %v2232
        %v2234 = vrot.slane %v2206, %v2233
        %v2236 = vunpack.c.l.s4 1983009808
        %v2237 = vunpack.c.0.s8 %v2236
        %v2238 = vlaneseq
        %v2239 = vshrl.u32 %v2238, 7
        %v2240 = vsub.s32 %v2237, %v2239
        %v2241 = vrot.slane %v2227, %v2240
        %v2242 = vcombine.low %v2219, %v2234
        %v2243 = vcombine.high %v2219, %v2234
        %v2245 = vunpack.c.l.s4 1934713408
        %v2246 = vunpack.c.0.s8 %v2245
        %v2247 = vlaneseq
        %v2248 = vshrl.u32 %v2247, 7
        %v2249 = vsub.s32 %v2246, %v2248
        %v2250 = vrot.slane %v2242, %v2249
        %v2252 = vunpack.c.l.s4 1934713408
        %v2253 = vunpack.c.0.s8 %v2252
        %v2254 = vlaneseq
        %v2255 = vshrl.u32 %v2254, 7
        %v2256 = vsub.s32 %v2253, %v2255
        %v2257 = vrot.slane %v2243, %v2256
        %v2258 = vcombine.low %v2226, %v2241
        %v2259 = vcombine.high %v2226, %v2241
        %v2261 = vunpack.c.l.s4 1934713408
        %v2262 = vunpack.c.0.s8 %v2261
        %v2263 = vlaneseq
        %v2264 = vshrl.u32 %v2263, 7
        %v2265 = vsub.s32 %v2262, %v2264
        %v2266 = vrot.slane %v2258, %v2265
        %v2268 = vunpack.c.l.s4 1934713408
        %v2269 = vunpack.c.0.s8 %v2268
        %v2270 = vlaneseq
        %v2271 = vshrl.u32 %v2270, 7
        %v2272 = vsub.s32 %v2269, %v2271
        %v2273 = vrot.slane %v2259, %v2272
        %v2274 = vcombine.high %v2250, 0
        %v2275 = vcombine.high %v2257, 0
        %v2276 = vcombine.high %v2266, 0
        %v2277 = vcombine.high %v2273, 0
        %v2278 = vcombine.high %v2202, %v333
        %v2280 = vunpack.c.l.s4 1983009808
        %v2281 = vunpack.c.0.s8 %v2280
        %v2282 = vlaneseq
        %v2283 = vshrl.u32 %v2282, 7
        %v2284 = vsub.s32 %v2281, %v2283
        %v2285 = vrot.slane %v2202, %v2284
        %v2287 = vunpack.c.l.s4 1983009808
        %v2288 = vunpack.c.0.s8 %v2287
        %v2289 = vlaneseq
        %v2290 = vshrl.u32 %v2289, 7
        %v2291 = vsub.s32 %v2288, %v2290
        %v2292 = vrot.slane %v2278, %v2291
        %v2293 = vcombine.high %v2210, %v333
        %v2295 = vunpack.c.l.s4 1983009808
        %v2296 = vunpack.c.0.s8 %v2295
        %v2297 = vlaneseq
        %v2298 = vshrl.u32 %v2297, 7
        %v2299 = vsub.s32 %v2296, %v2298
        %v2300 = vrot.slane %v2210, %v2299
        %v2302 = vunpack.c.l.s4 1983009808
        %v2303 = vunpack.c.0.s8 %v2302
        %v2304 = vlaneseq
        %v2305 = vshrl.u32 %v2304, 7
        %v2306 = vsub.s32 %v2303, %v2305
        %v2307 = vrot.slane %v2293, %v2306
        %v2308 = vcombine.low %v2285, %v2300
        %v2309 = vcombine.high %v2285, %v2300
        %v2311 = vunpack.c.l.s4 1934713408
        %v2312 = vunpack.c.0.s8 %v2311
        %v2313 = vlaneseq
        %v2314 = vshrl.u32 %v2313, 7
        %v2315 = vsub.s32 %v2312, %v2314
        %v2316 = vrot.slane %v2308, %v2315
        %v2318 = vunpack.c.l.s4 1934713408
        %v2319 = vunpack.c.0.s8 %v2318
        %v2320 = vlaneseq
        %v2321 = vshrl.u32 %v2320, 7
        %v2322 = vsub.s32 %v2319, %v2321
        %v2323 = vrot.slane %v2309, %v2322
        %v2324 = vcombine.low %v2292, %v2307
        %v2325 = vcombine.high %v2292, %v2307
        %v2327 = vunpack.c.l.s4 1934713408
        %v2328 = vunpack.c.0.s8 %v2327
        %v2329 = vlaneseq
        %v2330 = vshrl.u32 %v2329, 7
        %v2331 = vsub.s32 %v2328, %v2330
        %v2332 = vrot.slane %v2324, %v2331
        %v2334 = vunpack.c.l.s4 1934713408
        %v2335 = vunpack.c.0.s8 %v2334
        %v2336 = vlaneseq
        %v2337 = vshrl.u32 %v2336, 7
        %v2338 = vsub.s32 %v2335, %v2337
        %v2339 = vrot.slane %v2325, %v2338
        %v2340 = vcombine.high %v2316, 0
        %v2341 = vcombine.high %v2323, 0
        %v2342 = vcombine.high %v2332, 0
        %v2343 = vcombine.high %v2339, 0
        %2345 = vrot.lane.b32.xlu0 %v2316, 16
        %v2346 = vpop.permute.xlu0 %2345
        %2348 = vrot.lane.b32.xlu0 %v2274, 32
        %v2349 = vpop.permute.xlu0 %2348
        %2351 = vrot.lane.b32.xlu0 %v2340, 48
        %v2352 = vpop.permute.xlu0 %2351
        %2354 = vrot.lane.b32.xlu0 %v2257, 64
        %v2355 = vpop.permute.xlu0 %2354
        %2357 = vrot.lane.b32.xlu0 %v2323, 80
        %v2358 = vpop.permute.xlu0 %2357
        %2360 = vrot.lane.b32.xlu0 %v2275, 96
        %v2361 = vpop.permute.xlu0 %2360
        %2363 = vrot.lane.b32.xlu0 %v2341, 112
        %v2364 = vpop.permute.xlu0 %2363
        %2366 = vrot.lane.b32.xlu0 %v2332, 16
        %v2367 = vpop.permute.xlu0 %2366
        %2369 = vrot.lane.b32.xlu0 %v2276, 32
        %v2370 = vpop.permute.xlu0 %2369
        %2372 = vrot.lane.b32.xlu0 %v2342, 48
        %v2373 = vpop.permute.xlu0 %2372
        %2375 = vrot.lane.b32.xlu0 %v2273, 64
        %v2376 = vpop.permute.xlu0 %2375
        %2378 = vrot.lane.b32.xlu0 %v2339, 80
        %v2379 = vpop.permute.xlu0 %2378
        %2381 = vrot.lane.b32.xlu0 %v2277, 96
        %v2382 = vpop.permute.xlu0 %2381
        %2384 = vrot.lane.b32.xlu0 %v2343, 112
        %v2385 = vpop.permute.xlu0 %2384
        %v2388 = vsel %vm509, %v2250, %v2346
        %v2390 = vsel %vm513, %v2388, %v2349
        %v2392 = vsel %vm516, %v2390, %v2352
        %v2394 = vsel %vm519, %v2392, %v2355
        %v2396 = vsel %vm522, %v2394, %v2358
        %v2398 = vsel %vm525, %v2396, %v2361
        %v2400 = vsel %vm528, %v2398, %v2364
        %v2403 = vsel %vm509, %v2266, %v2367
        %v2405 = vsel %vm513, %v2403, %v2370
        %v2407 = vsel %vm516, %v2405, %v2373
        %v2409 = vsel %vm519, %v2407, %v2376
        %v2411 = vsel %vm522, %v2409, %v2379
        %v2413 = vsel %vm525, %v2411, %v2382
        %v2415 = vsel %vm528, %v2413, %v2385
        %v2418 = vrot.slane %v762, 6
        %v2419 = vrot.slane %v777, 6
        %v2422 = vrot.slane %v990, 4
        %v2423 = vrot.slane %v1005, 4
        %v2426 = vrot.slane %v1251, 2
        %v2427 = vrot.slane %v1266, 2
        %v2430 = vrot.slane %v1707, 6
        %v2431 = vrot.slane %v1722, 6
        %v2434 = vrot.slane %v1944, 4
        %v2435 = vrot.slane %v1959, 4
        %v2438 = vrot.slane %v2172, 2
        %v2439 = vrot.slane %v2187, 2
        %vm2440 = vcmask 1041408
        %v2442 = vsel %vm2440, %v530, %v2418
        %v2444 = vsel %vm2440, %v545, %v2419
        %vm2445 = vcmask 1043456
        %v2447 = vsel %vm2445, %v2442, %v2422
        %v2449 = vsel %vm2445, %v2444, %v2423
        %vm2450 = vcmask 1045504
        %v2452 = vsel %vm2450, %v2447, %v2426
        %v2455 = vsel %vm2450, %v2449, %v2427
        %v2458 = vsel %vm2440, %v1479, %v2430
        %v2460 = vsel %vm2440, %v1494, %v2431
        %v2462 = vsel %vm2445, %v2458, %v2434
        %v2464 = vsel %vm2445, %v2460, %v2435
        %v2466 = vsel %vm2450, %v2462, %v2438
        %v2469 = vsel %vm2450, %v2464, %v2439
        %v2471 = vld [vmem:[%s1] sm:$0xf]
        %v2472 = vld [vmem:[%s1 + $0x4] sm:$0xf]
        %v2473 = vld [vmem:[%s1 + $0x8] sm:$0xf]
        %v2474 = vld [vmem:[%s1 + $0xc] sm:$0xf]
        %v2475 = vld [vmem:[%s2] sm:$0xff]
        %v2476 = vld [vmem:[%s2 + $0x8] sm:$0xff]
        %v2477 = vld [vmem:[%s2 + $0x10] sm:$0xff]
        %v2478 = vld [vmem:[%s2 + $0x18] sm:$0xff]
        %2480 = vset.pattern.permute.xlu0 0
        %2481 = vperm.xlu0 %2480, %v2475
        %v2482 = vpop.permute.xlu0 %2481
        %2485 = vset.pattern.permute.xlu0 0
        %2486 = vperm.xlu0 %2485, %v2476
        %v2487 = vpop.permute.xlu0 %2486
        %2490 = vset.pattern.permute.xlu0 0
        %2491 = vperm.xlu0 %2490, %v2477
        %v2492 = vpop.permute.xlu0 %2491
        %2495 = vset.pattern.permute.xlu0 0
        %2496 = vperm.xlu0 %2495, %v2478
        %v2497 = vpop.permute.xlu0 %2496
        %v2503 = vunpack.c.l.b16 %v2471
        %v2504 = vunpack.c.l.b16 %v2472
        %v2505 = vunpack.c.l.b16 %v2473
        %v2506 = vunpack.c.l.b16 %v2474
        %v2507 = vpack.c.b16 %v2504, %v2503
        %v2508 = vpack.c.b16 %v2506, %v2505
        %vm2509 = vcmask 293888
        %v2511 = vsel %vm2509, %v2507, 0
        %v2514 = vsel %vm2509, %v2508, 0
        %v2516 = vsel %vm2440, %v2400, 0
        %v2518 = vsel %vm2440, %v2415, 0
        %2520 = vmatprep.subr.bf16.mxu0 %v2455
        %2521 = vmatpush1.bf16.msra.mxu0 %v2452
        %2522 = vmatprep.subr.bf16.mxu0 %v2469
        %2523 = vmatpush1.bf16.msra.mxu0 %v2466
        %2524 = vmatprep.subr.bf16.mxu0 %v2518
        %2525 = vmatpush1.bf16.msra.mxu0 %v2516
        %2526 = vmatprep.subr.bf16.mxu0 0
        %2527 = vmatpush1.bf16.msra.mxu0 0
        %2528 = vmatprep.subr.bf16.mxu0 0
        %2529 = vmatpush1.bf16.msra.mxu0 0
        %2530 = vmatprep.subr.bf16.mxu0 0
        %2531 = vmatpush1.bf16.msra.mxu0 0
        %2532 = vmatprep.subr.bf16.mxu0 0
        %2533 = vmatpush1.bf16.msra.mxu0 0
        %2534 = vmatprep.subr.bf16.mxu0 0
        %2535 = vmatpush1.bf16.msra.mxu0 0
        %2536 = vmatprep.subr.bf16.mxu0 0
        %2537 = vmatpush1.bf16.msra.mxu0 0
        %2538 = vmatprep.subr.bf16.mxu0 0
        %2539 = vmatpush1.bf16.msra.mxu0 0
        %2540 = vmatprep.subr.bf16.mxu0 0
        %2541 = vmatpush1.bf16.msra.mxu0 0
        %2542 = vmatprep.subr.bf16.mxu0 0
        %2543 = vmatpush1.bf16.msra.mxu0 0
        %2544 = vmatprep.subr.bf16.mxu0 0
        %2545 = vmatpush1.bf16.msra.mxu0 0
        %2546 = vmatprep.subr.bf16.mxu0 0
        %2547 = vmatpush1.bf16.msra.mxu0 0
        %2548 = vmatprep.subr.bf16.mxu0 0
        %2549 = vmatpush1.bf16.msra.mxu0 0
        %2550 = vmatprep.subr.bf16.mxu0 0
        %2551 = vmatpush1.bf16.msra.mxu0 0
        %2552 = vmatprep.mubr.bf16.mxu0 0
        %2553 = vmatmul.mubr.bf16.gmra.mrb[0].mxu0 %v2511
        %v2554 = vpop.f32.mrb[0].mxu0
        %v2555 = vadd.f32 %v2482, %v2554
        %v2556 = vpop.f32.mrb[0].mxu0
        %v2557 = vadd.f32 %v2482, %v2556
        %v2558 = vpop.f32.mrb[0].mxu0
        %v2559 = vadd.f32 %v2487, %v2558
        %v2560 = vpop.f32.mrb[0].mxu0
        %v2561 = vadd.f32 %v2487, %v2560
        %2562 = vmatprep.mubr.bf16.mxu0 0
        %2563 = vmatmul.mubr.bf16.gmra.mrb[0].mxu0 %v2514
        %v2564 = vpop.f32.mrb[0].mxu0
        %v2565 = vadd.f32 %v2492, %v2564
        %v2566 = vpop.f32.mrb[0].mxu0
        %v2567 = vadd.f32 %v2492, %v2566
        %v2568 = vpop.f32.mrb[0].mxu0
        %v2569 = vadd.f32 %v2497, %v2568
        %v2570 = vpop.f32.mrb[0].mxu0
        %v2571 = vadd.f32 %v2497, %v2570
        %2572 = vdwg.mxu0
        %v2573 = vmax.f32 %v2555, 0.0
        %v2574 = vmax.f32 %v2557, 0.0
        %v2575 = vmax.f32 %v2559, 0.0
        %v2576 = vmax.f32 %v2561, 0.0
        %v2577 = vmax.f32 %v2565, 0.0
        %v2578 = vmax.f32 %v2567, 0.0
        %v2579 = vmax.f32 %v2569, 0.0
        %v2580 = vmax.f32 %v2571, 0.0
        %v2581 = vpack.c.bf16 %v2575, %v2573
        %v2582 = vpack.c.bf16 %v2576, %v2574
        %v2583 = vpack.c.bf16 %v2579, %v2577
        %v2584 = vpack.c.bf16 %v2580, %v2578
        %v2589 = vunpack.c.l.b16 %v2581
        %v2590 = vunpack.c.l.b16 %v2582
        %v2591 = vunpack.c.h.b16 %v2581
        %v2592 = vunpack.c.h.b16 %v2582
        %v2593 = vunpack.c.l.b16 %v2583
        %v2594 = vunpack.c.l.b16 %v2584
        %v2595 = vunpack.c.h.b16 %v2583
        %v2596 = vunpack.c.h.b16 %v2584
        %v2597 = vpack.c.b16 %v2590, %v2589
        %v2598 = vpack.c.b16 %v2592, %v2591
        %v2599 = vpack.c.b16 %v2594, %v2593
        %v2600 = vpack.c.b16 %v2596, %v2595
        %2605 = vst [vmem:[%s188] sm:$0xff] %v2597
        %2606 = vst [vmem:[%s188 + $0x8] sm:$0xff] %v2598
        %2607 = vst [vmem:[%s188 + $0x10] sm:$0xff] %v2599
        %2608 = vst [vmem:[%s188 + $0x18] sm:$0xff] %v2600
        %s2609 = sand.u32 %s96, 1
        %s2610 = scalar_lea.sflag [#allocation4], %s2609
        %s2611 = sand.u32 %s96, 1
        %s2612 = smul.addr %s2611, 32
        %s2613 = scalar_lea.vmem [#allocation5], %s2612
        // Predicated region
        $region37: #{tpu_custom_call.1} parent=31 // pred_check
          %p2614 = pneg %p106
        $region38: #{tpu_custom_call.1} parent=31 // pred_check_branch
          %2616 = sbr.rel (%p2614) target = $region40
        $region39: #{tpu_custom_call.1} parent=31 // pred_region
          %s2618 = ssub.s32 512, 512
          %2619 = vsyncadd %s2610, %s2618
          %s2620 = smul.addr %s20, 8
          %s2621 = smul.addr %s2620, 64
          %s2622 = scalar_lea.hbm %s3, %s2621
          %s2623 = sshll.u32 %s2613, 4
          %s2624 = int_to_ptr.vmem [resolvable:$true] %s2623
          %2629 = dma.vmem_to_hbm [thread:$0]  %s2624, 512, %s2622, %s2610, 128, 128, 8
        $region40: #{tpu_custom_call.1} parent=31 // pred_fallthru
          _
      $region32: #{tpu_custom_call.1} parent=5 // pred_fallthru
        _
      %p2630 = scmp.le.s32.totalorder 2, %s15
      // Predicated region
      $region41: #{tpu_custom_call.1} parent=5 // pred_check
        %p2631 = pneg %p2630
      $region42: #{tpu_custom_call.1} parent=5 // pred_check_branch
        %2633 = sbr.rel (%p2631) target = $region44
      $region43: #{tpu_custom_call.1} parent=5 // pred_region
        %s2634 = ssub.s32 %s15, 2
        // Predicated region
        $region45: #{tpu_custom_call.1} parent=43 // pred_check
          %p2635 = pneg %p112
        $region46: #{tpu_custom_call.1} parent=43 // pred_check_branch
          %2637 = sbr.rel (%p2635) target = $region48
        $region47: #{tpu_custom_call.1} parent=43 // pred_region
          %s2638 = sand.u32 %s97, 1
          %s2639 = scalar_lea.sflag [#allocation4], %s2638
          %s2640 = sand.u32 %s97, 1
          %s2641 = smul.addr %s2640, 32
          %s2642 = scalar_lea.vmem [#allocation5], %s2641
          %2643 = dma.done %s2639, 512
        $region48: #{tpu_custom_call.1} parent=43 // pred_fallthru
          _
      $region44: #{tpu_custom_call.1} parent=5 // pred_fallthru
        _
    $region6: #{tpu_custom_call.1} parent=1 // loop_footer
      %s19 = sadd.s32 1, %s15
    $region7: #{tpu_custom_call.1} parent=1 // loop_footer_branch
      %14 = sbr.rel target = $region3
    $region8: #{tpu_custom_call.1} parent=1 // loop_exit
      _
    %2644 = vsyncpa [#allocation3], 1
    %s2645 = scalar_lea.sflag [#allocation3], 1
    %2646 = vsyncpa %s2645, 1
    %2647 = vsyncpa [#allocation4], 1
    %s2648 = scalar_lea.sflag [#allocation4], 1
    %2649 = vsyncpa %s2648, 1

</llo_original>
